<compile_context>
chip_gen: v5e
topology: v5e:2x2
jax: 0.10.0
libtpu: 0.0.40
codegen_flags: <defaults>
</compile_context>

<pallas_src>
import functools
import math

import jax
import jax.numpy as jnp
from jax.experimental import pallas as pl
from jax.experimental.pallas import tpu as pltpu


# ---------------------------------------------------------------------------
# call 1: fused projection + score precompute (runs once)
# ---------------------------------------------------------------------------
def _proj_scores_kernel(x_ref, wcat_ref, a0_ref, xp1pad_ref, s0_ref, s1_ref,
                        *, alpha, f_out):
    # [N, F_in] x [F_in, 2*F_out] -> [N, 2*F_out] on the MXU (f32 accumulate).
    p = jnp.dot(x_ref[...], wcat_ref[...], preferred_element_type=jnp.float32)
    xp = jnp.where(p > 0, p, alpha * p)            # LeakyReLU in f32 (v5e-safe VPU)
    xp0 = xp[:, :f_out]
    xp1 = xp[:, f_out:]
    a0f = a0_ref[...].astype(jnp.float32)          # [1, F_out]

    # destination-node score in its natural column layout (VPU mul + XLU reduce)
    s0_ref[...] = jnp.sum(xp0 * a0f, axis=-1, keepdims=True)              # [N, 1]
    # source-node score directly in ROW layout (contract F on both operands,
    # same pattern as q @ k.T) -> no sublane->lane transpose later.
    s1_ref[...] = jnp.einsum("of,nf->on", a0f, xp1,
                             preferred_element_type=jnp.float32)           # [1, N]

    # xp1 padded to 128 lanes, tail filled with 1.0: the pass-2 SpMM then yields
    # rows_sum in column f_out for free (lane-dense MXU, no extra XLU reduce).
    n = xp1.shape[0]
    pad = xp1pad_ref.shape[1] - f_out
    xp1pad_ref[...] = jnp.concatenate(
        [xp1, jnp.ones((n, pad), jnp.float32)], axis=-1).astype(xp1pad_ref.dtype)


# ---------------------------------------------------------------------------
# call 2 (pass 1): per-row-tile masked edge-score min/max partials
# ---------------------------------------------------------------------------
def _edge_minmax_kernel(s0_ref, s1_ref, adj_ref, mm_ref):
    @pl.when(pl.program_id(0) == 0)
    def _():
        mm_ref[...] = jnp.full(mm_ref.shape, -jnp.inf, dtype=mm_ref.dtype)

    e = s0_ref[...] + s1_ref[...]                  # [T,1] + [1,N] -> [T,N]
    mask = adj_ref[...] != 0
    col_max = jnp.max(jnp.where(mask, e, -jnp.inf), axis=0, keepdims=True)    # [1,N]
    col_negmax = jnp.max(jnp.where(mask, -e, -jnp.inf), axis=0, keepdims=True)
    mm_ref[...] = jnp.maximum(mm_ref[...],
                              jnp.concatenate([col_max, col_negmax], axis=0))


# ---------------------------------------------------------------------------
# call 3 (pass 2): exp-normalize + mask + SpMM(+rowsum via ones column) + divide
# ---------------------------------------------------------------------------
def _att_spmm_kernel(stats_ref, s0_ref, s1_ref, adj_ref, xp1pad_ref, out_ref,
                     *, f_out):
    e_min = stats_ref[0]                           # SMEM scalars
    inv_range = stats_ref[1]
    e = s0_ref[...] + s1_ref[...]                  # [T, N]
    mask = adj_ref[...] != 0
    # where() (not exp(...)*adj) avoids inf*0 -> NaN on non-edges; exp stays f32.
    att = jnp.where(mask, jnp.exp((e - e_min) * inv_range), 0.0)
    # lane-dense [T,N] x [N,128] bf16 MXU matmul; column f_out is rows_sum.
    res = jnp.dot(att.astype(jnp.bfloat16), xp1pad_ref[...],
                  preferred_element_type=jnp.float32)          # [T, 128]
    rows_sum = res[:, f_out:f_out + 1]                         # [T, 1]
    # guard isolated nodes (rows_sum == 0): numerator is 0 too -> output 0.
    inv_rs = pl.reciprocal(jnp.maximum(rows_sum, 1e-20), approx=True)
    out_ref[...] = (res * inv_rs).astype(out_ref.dtype)        # lane-dense store


def _pick_row_tile(n):
    """Largest row tile (multiple of 32, for int8 sublane packing) that divides N
    and leaves >= 2 grid steps (so pipelining / v7x megacore have work)."""
    for t in (512, 256, 128, 64, 32):
        if t <= n and n % t == 0 and n // t >= 2:
            return t
    for t in (512, 256, 128, 64, 32):
        if t <= n and n % t == 0:
            return t
    return n


def gatv2_conv_multi(x, adj, w0, w1, a0, *, alpha=0.2):
    n, f_in = x.shape
    f_out = w0.shape[1]
    assert adj.shape == (n, n)

    w_cat = jnp.concatenate([w0, w1], axis=1)                 # [F_in, 2*F_out]
    adj_i8 = adj if adj.dtype == jnp.int8 else adj.astype(jnp.int8)
    p_lanes = ((f_out + 1 + 127) // 128) * 128                # padded lane width
    tile = _pick_row_tile(n)
    num_tiles = n // tile

    # ---- call 1: projection + scores (small, grid=(1,)) ----------------------
    xp1pad, s0, s1r = pl.pallas_call(
        functools.partial(_proj_scores_kernel, alpha=alpha, f_out=f_out),
        out_shape=(jax.ShapeDtypeStruct((n, p_lanes), jnp.bfloat16),
                   jax.ShapeDtypeStruct((n, 1), jnp.float32),
                   jax.ShapeDtypeStruct((1, n), jnp.float32)),
        grid_spec=pl.GridSpec(
            grid=(1,),
            in_specs=[pl.BlockSpec((n, f_in), lambda i: (0, 0)),
                      pl.BlockSpec((f_in, 2 * f_out), lambda i: (0, 0)),
                      pl.BlockSpec((1, f_out), lambda i: (0, 0))],
            out_specs=(pl.BlockSpec((n, p_lanes), lambda i: (0, 0)),
                       pl.BlockSpec((n, 1), lambda i: (0, 0)),
                       pl.BlockSpec((1, n), lambda i: (0, 0)))),
        compiler_params=pltpu.CompilerParams(dimension_semantics=("arbitrary",)),
    )(x, w_cat, a0)

    # ---- call 2 (pass 1): global edge min/max via row-tiled partials ---------
    mm = pl.pallas_call(
        _edge_minmax_kernel,
        out_shape=jax.ShapeDtypeStruct((2, n), jnp.float32),
        grid_spec=pl.GridSpec(
            grid=(num_tiles,),
            in_specs=[pl.BlockSpec((tile, 1), lambda i: (i, 0)),
                      pl.BlockSpec((1, n), lambda i: (0, 0)),
                      pl.BlockSpec((tile, n), lambda i: (i, 0))],
            out_specs=pl.BlockSpec((2, n), lambda i: (0, 0))),
        compiler_params=pltpu.CompilerParams(dimension_semantics=("arbitrary",)),
    )(s0, s1r, adj_i8)

    # tiny host reductions -> scalars handed to pass 2 via SMEM
    e_max = jnp.max(mm[0])
    e_min = -jnp.max(mm[1])
    # guard e_max == e_min (constant edge scores): avoids 1/0 -> inf -> NaN.
    inv_range = 1.0 / jnp.maximum(e_max - e_min, 1e-12)
    stats = jnp.stack([e_min, inv_range]).astype(jnp.float32)   # shape (2,)

    # ---- call 3 (pass 2): exp-normalize + SpMM(+rowsum) + divide, parallel ---
    out_pad = pl.pallas_call(
        functools.partial(_att_spmm_kernel, f_out=f_out),
        out_shape=jax.ShapeDtypeStruct((n, p_lanes), jnp.bfloat16),
        grid_spec=pl.GridSpec(
            grid=(num_tiles,),
            in_specs=[pl.BlockSpec(memory_space=pltpu.MemorySpace.SMEM),
                      pl.BlockSpec((tile, 1), lambda i: (i, 0)),
                      pl.BlockSpec((1, n), lambda i: (0, 0)),
                      pl.BlockSpec((tile, n), lambda i: (i, 0)),
                      pl.BlockSpec((n, p_lanes), lambda i: (0, 0))],
            out_specs=pl.BlockSpec((tile, p_lanes), lambda i: (i, 0))),
        compiler_params=pltpu.CompilerParams(dimension_semantics=("parallel",)),
    )(stats, s0, s1r, adj_i8, xp1pad)

    # slice the lane-dense padded slab back to [N, F_out] (cheap XLA slice)
    return out_pad[:, :f_out]


def _reference(x, adj, w0, w1, a0, alpha):
    """Pure-JAX reference mirroring the torch forward (eval mode)."""
    f32 = jnp.float32
    p0 = jnp.dot(x, w0, preferred_element_type=f32)
    p1 = jnp.dot(x, w1, preferred_element_type=f32)
    xp0 = jnp.where(p0 > 0, p0, alpha * p0)
    xp1 = jnp.where(p1 > 0, p1, alpha * p1)
    a0f = a0.astype(f32)
    s0 = xp0 @ a0f.T
    s1 = (xp1 @ a0f.T).T
    e = s0 + s1
    mask = adj > 0
    e_max = jnp.max(jnp.where(mask, e, -jnp.inf))
    e_min = jnp.min(jnp.where(mask, e, jnp.inf))
    att = jnp.where(mask, jnp.exp((e - e_min) / (e_max - e_min)), 0.0)
    rows_sum = jnp.sum(att, axis=1, keepdims=True)
    h = att @ xp1
    return (h / rows_sum).astype(jnp.bfloat16)


if __name__ == "__main__":
    N, F_IN, F_OUT = 128, 64, 64
    ALPHA = 0.2          # LeakyReLU negative slope (dropout=0: eval mode -> identity)

    key = jax.random.PRNGKey(0)
    kx, kw0, kw1, ka0, kadj = jax.random.split(key, 5)

    # xavier_normal_ with gain = calculate_gain('relu') = sqrt(2)
    gain = math.sqrt(2.0)
    std_w = gain * math.sqrt(2.0 / (F_IN + F_OUT))
    std_a = gain * math.sqrt(2.0 / (1 + F_OUT))
    w0 = (jax.random.normal(kw0, (F_IN, F_OUT), jnp.float32) * std_w).astype(jnp.bfloat16)
    w1 = (jax.random.normal(kw1, (F_IN, F_OUT), jnp.float32) * std_w).astype(jnp.bfloat16)
    a0 = (jax.random.normal(ka0, (1, F_OUT), jnp.float32) * std_a).astype(jnp.bfloat16)

    x = jax.random.normal(kx, (N, F_IN), jnp.float32).astype(jnp.bfloat16)

    # random sparse graph (~10% density) with self-loops so every row has >=1 edge
    adj_f32 = (jax.random.uniform(kadj, (N, N)) < 0.1).astype(jnp.float32)
    adj_f32 = jnp.maximum(adj_f32, jnp.eye(N, dtype=jnp.float32))
    adj = adj_f32.astype(jnp.int8)            # kernels consume the int8 mask

    run = jax.jit(functools.partial(gatv2_conv_multi, alpha=ALPHA))
    out = jax.block_until_ready(run(x, adj, w0, w1, a0))

    ref = _reference(x.astype(jnp.float32), adj_f32, w0.astype(jnp.float32),
                     w1.astype(jnp.float32), a0, ALPHA)

    assert out.shape == (N, F_OUT) and out.dtype == jnp.bfloat16
    assert bool(jnp.all(jnp.isfinite(out.astype(jnp.float32))))
    ref_f = ref.astype(jnp.float32)
    err = jnp.max(jnp.abs(out.astype(jnp.float32) - ref_f) / (1.0 + jnp.abs(ref_f)))
    assert float(err) < 5e-2, f"scaled error too large: {float(err)}"

    print("KERNEL_OK")
</pallas_src>

<mosaic_0001>
module attributes {stable_mosaic.version = 11 : i64} {
  func.func @_edge_minmax_kernel(%arg0: i32, %arg1: memref<64x1xf32, #tpu.memory_space<vmem>>, %arg2: memref<1x128xf32, #tpu.memory_space<vmem>>, %arg3: memref<64x128xi8, #tpu.memory_space<vmem>>, %arg4: memref<2x128xf32, #tpu.memory_space<vmem>>) attributes {dimension_semantics = [#tpu.dimension_semantics<arbitrary>], iteration_bounds = array<i64: 2>, scalar_prefetch = 0 : i64, scratch_operands = 0 : i64, tpu.core_type = #tpu.core_type<tc>, window_params = [{transform_indices = @transform_0, window_bounds = array<i64: 64, 1>}, {pipeline_mode = #tpu.pipeline_mode<synchronous>, transform_indices = @transform_1, window_bounds = array<i64: 1, 128>}, {transform_indices = @transform_2, window_bounds = array<i64: 64, 128>}, {pipeline_mode = #tpu.pipeline_mode<synchronous>, transform_indices = @transform_3, window_bounds = array<i64: 2, 128>}]} {
    %c0_i32 = arith.constant 0 : i32
    %0 = arith.cmpi eq, %arg0, %c0_i32 : i32
    %1 = arith.extui %0 : i1 to i32
    %c0_i32_0 = arith.constant 0 : i32
    %2 = arith.cmpi ne, %1, %c0_i32_0 : i32
    scf.if %2 {
      %cst_14 = arith.constant 0xFF800000 : f32
      %25 = vector.broadcast %cst_14 : f32 to vector<2x128xf32>
      %c0_15 = arith.constant 0 : index
      %c0_16 = arith.constant 0 : index
      %26 = vector.load %arg4[%c0_15, %c0_16] : memref<2x128xf32, #tpu.memory_space<vmem>>, vector<2x128xf32>
      tpu.vector_store %arg4[%c0_15, %c0_16], %25 {strides = array<i32>} : memref<2x128xf32, #tpu.memory_space<vmem>>, vector<2x128xf32>,
    } else {
    }
    %c0 = arith.constant 0 : index
    %c0_1 = arith.constant 0 : index
    %3 = vector.load %arg1[%c0, %c0_1] : memref<64x1xf32, #tpu.memory_space<vmem>>, vector<64x1xf32>
    %c0_2 = arith.constant 0 : index
    %c0_3 = arith.constant 0 : index
    %4 = vector.load %arg2[%c0_2, %c0_3] : memref<1x128xf32, #tpu.memory_space<vmem>>, vector<1x128xf32>
    %5 = vector.broadcast %3 : vector<64x1xf32> to vector<64x128xf32>
    %6 = vector.broadcast %4 : vector<1x128xf32> to vector<64x128xf32>
    %7 = arith.addf %5, %6 : vector<64x128xf32>
    %c0_4 = arith.constant 0 : index
    %c0_5 = arith.constant 0 : index
    %8 = vector.load %arg3[%c0_4, %c0_5] : memref<64x128xi8, #tpu.memory_space<vmem>>, vector<64x128xi8>
    %c0_i8 = arith.constant 0 : i8
    %9 = vector.broadcast %c0_i8 : i8 to vector<64x128xi8>
    %10 = arith.cmpi ne, %8, %9 : vector<64x128xi8>
    %cst = arith.constant 0xFF800000 : f32
    %11 = vector.broadcast %cst : f32 to vector<64x128xf32>
    %12 = arith.select %10, %7, %11 : vector<64x128xi1>, vector<64x128xf32>
    %cst_6 = arith.constant dense<0xFF800000> : vector<128xf32>
    %13 = vector.multi_reduction <maximumf>, %12, %cst_6 [0] : vector<64x128xf32> to vector<128xf32>
    %14 = vector.shape_cast %13 : vector<128xf32> to vector<1x128xf32>
    %cst_7 = arith.constant 0.000000e+00 : f32
    %15 = vector.broadcast %cst_7 : f32 to vector<64x128xf32>
    %16 = arith.subf %15, %7 : vector<64x128xf32>
    %cst_8 = arith.constant 0xFF800000 : f32
    %17 = vector.broadcast %cst_8 : f32 to vector<64x128xf32>
    %18 = arith.select %10, %16, %17 : vector<64x128xi1>, vector<64x128xf32>
    %cst_9 = arith.constant dense<0xFF800000> : vector<128xf32>
    %19 = vector.multi_reduction <maximumf>, %18, %cst_9 [0] : vector<64x128xf32> to vector<128xf32>
    %20 = vector.shape_cast %19 : vector<128xf32> to vector<1x128xf32>
    %c0_10 = arith.constant 0 : index
    %c0_11 = arith.constant 0 : index
    %21 = vector.load %arg4[%c0_10, %c0_11] : memref<2x128xf32, #tpu.memory_space<vmem>>, vector<2x128xf32>
    %22 = tpu.concatenate %14, %20 in 0 : vector<1x128xf32>, vector<1x128xf32> -> vector<2x128xf32>
    %23 = arith.maximumf %21, %22 : vector<2x128xf32>
    %c0_12 = arith.constant 0 : index
    %c0_13 = arith.constant 0 : index
    %24 = vector.load %arg4[%c0_12, %c0_13] : memref<2x128xf32, #tpu.memory_space<vmem>>, vector<2x128xf32>
    tpu.vector_store %arg4[%c0_12, %c0_13], %23 {strides = array<i32>} : memref<2x128xf32, #tpu.memory_space<vmem>>, vector<2x128xf32>,
    return
  }
  func.func @transform_0(%arg0: i32) -> (i32, i32) {
    %c0_i32 = arith.constant 0 : i32
    %c0_i32_0 = arith.constant 0 : i32
    return %arg0, %c0_i32 : i32, i32
  }
  func.func @transform_1(%arg0: i32) -> (i32, i32) {
    %c0_i32 = arith.constant 0 : i32
    %c0_i32_0 = arith.constant 0 : i32
    %c0_i32_1 = arith.constant 0 : i32
    return %c0_i32, %c0_i32_0 : i32, i32
  }
  func.func @transform_2(%arg0: i32) -> (i32, i32) {
    %c0_i32 = arith.constant 0 : i32
    %c0_i32_0 = arith.constant 0 : i32
    return %arg0, %c0_i32 : i32, i32
  }
  func.func @transform_3(%arg0: i32) -> (i32, i32) {
    %c0_i32 = arith.constant 0 : i32
    %c0_i32_0 = arith.constant 0 : i32
    %c0_i32_1 = arith.constant 0 : i32
    return %c0_i32, %c0_i32_0 : i32, i32
  }
}

module attributes {stable_mosaic.version = 11 : i64} {
  func.func @_proj_scores_kernel(%arg0: i32, %arg1: memref<128x64xbf16, #tpu.memory_space<vmem>>, %arg2: memref<64x128xbf16, #tpu.memory_space<vmem>>, %arg3: memref<1x64xbf16, #tpu.memory_space<vmem>>, %arg4: memref<128x128xbf16, #tpu.memory_space<vmem>>, %arg5: memref<128x1xf32, #tpu.memory_space<vmem>>, %arg6: memref<1x128xf32, #tpu.memory_space<vmem>>) attributes {dimension_semantics = [#tpu.dimension_semantics<arbitrary>], iteration_bounds = array<i64: 1>, scalar_prefetch = 0 : i64, scratch_operands = 0 : i64, tpu.core_type = #tpu.core_type<tc>, window_params = [{pipeline_mode = #tpu.pipeline_mode<synchronous>, transform_indices = @transform_0, window_bounds = array<i64: 128, 64>}, {pipeline_mode = #tpu.pipeline_mode<synchronous>, transform_indices = @transform_1, window_bounds = array<i64: 64, 128>}, {pipeline_mode = #tpu.pipeline_mode<synchronous>, transform_indices = @transform_2, window_bounds = array<i64: 1, 64>}, {pipeline_mode = #tpu.pipeline_mode<synchronous>, transform_indices = @transform_3, window_bounds = array<i64: 128, 128>}, {pipeline_mode = #tpu.pipeline_mode<synchronous>, transform_indices = @transform_4, window_bounds = array<i64: 128, 1>}, {pipeline_mode = #tpu.pipeline_mode<synchronous>, transform_indices = @transform_5, window_bounds = array<i64: 1, 128>}]} {
    %c0 = arith.constant 0 : index
    %c0_0 = arith.constant 0 : index
    %0 = vector.load %arg1[%c0, %c0_0] : memref<128x64xbf16, #tpu.memory_space<vmem>>, vector<128x64xbf16>
    %c0_1 = arith.constant 0 : index
    %c0_2 = arith.constant 0 : index
    %1 = vector.load %arg2[%c0_1, %c0_2] : memref<64x128xbf16, #tpu.memory_space<vmem>>, vector<64x128xbf16>
    %cst = arith.constant dense<0.000000e+00> : vector<128x128xf32>
    %2 = tpu.matmul %0, %1, %cst {dimension_numbers = #tpu.dot_dimension_numbers<[1], [0], [0], [1], [0, 0, 1, 1], [], []>} : vector<128x64xbf16>, vector<64x128xbf16>, vector<128x128xf32> -> vector<128x128xf32>
    %cst_3 = arith.constant 0.000000e+00 : f32
    %3 = vector.broadcast %cst_3 : f32 to vector<128x128xf32>
    %4 = arith.cmpf ogt, %2, %3 : vector<128x128xf32>
    %cst_4 = arith.constant 2.000000e-01 : f32
    %5 = vector.broadcast %cst_4 : f32 to vector<128x128xf32>
    %6 = arith.mulf %5, %2 : vector<128x128xf32>
    %7 = arith.select %4, %2, %6 : vector<128x128xi1>, vector<128x128xf32>
    %8 = vector.extract_strided_slice %7 {offsets = [0, 0], sizes = [128, 64], strides = [1, 1]} : vector<128x128xf32> to vector<128x64xf32>
    %9 = vector.extract_strided_slice %7 {offsets = [0, 64], sizes = [128, 64], strides = [1, 1]} : vector<128x128xf32> to vector<128x64xf32>
    %c0_5 = arith.constant 0 : index
    %c0_6 = arith.constant 0 : index
    %10 = vector.load %arg3[%c0_5, %c0_6] : memref<1x64xbf16, #tpu.memory_space<vmem>>, vector<1x64xbf16>
    %11 = arith.extf %10 : vector<1x64xbf16> to vector<1x64xf32>
    %12 = vector.broadcast %11 : vector<1x64xf32> to vector<128x64xf32>
    %13 = arith.mulf %8, %12 : vector<128x64xf32>
    %cst_7 = arith.constant dense<0.000000e+00> : vector<128xf32>
    %14 = vector.multi_reduction <add>, %13, %cst_7 [1] : vector<128x64xf32> to vector<128xf32>
    %15 = vector.shape_cast %14 : vector<128xf32> to vector<128x1xf32>
    %c0_8 = arith.constant 0 : index
    %c0_9 = arith.constant 0 : index
    %16 = vector.load %arg5[%c0_8, %c0_9] : memref<128x1xf32, #tpu.memory_space<vmem>>, vector<128x1xf32>
    tpu.vector_store %arg5[%c0_8, %c0_9], %15 {strides = array<i32>} : memref<128x1xf32, #tpu.memory_space<vmem>>, vector<128x1xf32>,
    "tpu.trace_start"() <{level = 10 : i32, message = "of,nf->on"}> : () -> ()
    %cst_10 = arith.constant dense<0.000000e+00> : vector<1x128xf32>
    %17 = tpu.matmul %11, %9, %cst_10 {dimension_numbers = #tpu.dot_dimension_numbers<[1], [1], [0], [0], [0, 0, 1, 0], [], []>} : vector<1x64xf32>, vector<128x64xf32>, vector<1x128xf32> -> vector<1x128xf32>
    "tpu.trace_stop"() : () -> ()
    %c0_11 = arith.constant 0 : index
    %c0_12 = arith.constant 0 : index
    %18 = vector.load %arg6[%c0_11, %c0_12] : memref<1x128xf32, #tpu.memory_space<vmem>>, vector<1x128xf32>
    tpu.vector_store %arg6[%c0_11, %c0_12], %17 {strides = array<i32>} : memref<1x128xf32, #tpu.memory_space<vmem>>, vector<1x128xf32>,
    %cst_13 = arith.constant 1.000000e+00 : f32
    %19 = vector.broadcast %cst_13 : f32 to vector<128x64xf32>
    %20 = tpu.concatenate %9, %19 in 1 : vector<128x64xf32>, vector<128x64xf32> -> vector<128x128xf32>
    %21 = arith.truncf %20 : vector<128x128xf32> to vector<128x128xbf16>
    %c0_14 = arith.constant 0 : index
    %c0_15 = arith.constant 0 : index
    %22 = vector.load %arg4[%c0_14, %c0_15] : memref<128x128xbf16, #tpu.memory_space<vmem>>, vector<128x128xbf16>
    tpu.vector_store %arg4[%c0_14, %c0_15], %21 {strides = array<i32>} : memref<128x128xbf16, #tpu.memory_space<vmem>>, vector<128x128xbf16>,
    return
  }
  func.func @transform_0(%arg0: i32) -> (i32, i32) {
    %c0_i32 = arith.constant 0 : i32
    %c0_i32_0 = arith.constant 0 : i32
    %c0_i32_1 = arith.constant 0 : i32
    return %c0_i32, %c0_i32_0 : i32, i32
  }
  func.func @transform_1(%arg0: i32) -> (i32, i32) {
    %c0_i32 = arith.constant 0 : i32
    %c0_i32_0 = arith.constant 0 : i32
    %c0_i32_1 = arith.constant 0 : i32
    return %c0_i32, %c0_i32_0 : i32, i32
  }
  func.func @transform_2(%arg0: i32) -> (i32, i32) {
    %c0_i32 = arith.constant 0 : i32
    %c0_i32_0 = arith.constant 0 : i32
    %c0_i32_1 = arith.constant 0 : i32
    return %c0_i32, %c0_i32_0 : i32, i32
  }
  func.func @transform_3(%arg0: i32) -> (i32, i32) {
    %c0_i32 = arith.constant 0 : i32
    %c0_i32_0 = arith.constant 0 : i32
    %c0_i32_1 = arith.constant 0 : i32
    return %c0_i32, %c0_i32_0 : i32, i32
  }
  func.func @transform_4(%arg0: i32) -> (i32, i32) {
    %c0_i32 = arith.constant 0 : i32
    %c0_i32_0 = arith.constant 0 : i32
    %c0_i32_1 = arith.constant 0 : i32
    return %c0_i32, %c0_i32_0 : i32, i32
  }
  func.func @transform_5(%arg0: i32) -> (i32, i32) {
    %c0_i32 = arith.constant 0 : i32
    %c0_i32_0 = arith.constant 0 : i32
    %c0_i32_1 = arith.constant 0 : i32
    return %c0_i32, %c0_i32_0 : i32, i32
  }
}

module attributes {stable_mosaic.version = 11 : i64} {
  func.func @_att_spmm_kernel(%arg0: i32, %arg1: memref<2xf32, #tpu.memory_space<smem>>, %arg2: memref<64x1xf32, #tpu.memory_space<vmem>>, %arg3: memref<1x128xf32, #tpu.memory_space<vmem>>, %arg4: memref<64x128xi8, #tpu.memory_space<vmem>>, %arg5: memref<128x128xbf16, #tpu.memory_space<vmem>>, %arg6: memref<64x128xbf16, #tpu.memory_space<vmem>>) attributes {dimension_semantics = [#tpu.dimension_semantics<parallel>], iteration_bounds = array<i64: 2>, scalar_prefetch = 0 : i64, scratch_operands = 0 : i64, tpu.core_type = #tpu.core_type<tc>, window_params = [{transform_indices = @transform_0, window_bounds = array<i64: 2>}, {transform_indices = @transform_1, window_bounds = array<i64: 64, 1>}, {pipeline_mode = #tpu.pipeline_mode<synchronous>, transform_indices = @transform_2, window_bounds = array<i64: 1, 128>}, {transform_indices = @transform_3, window_bounds = array<i64: 64, 128>}, {pipeline_mode = #tpu.pipeline_mode<synchronous>, transform_indices = @transform_4, window_bounds = array<i64: 128, 128>}, {transform_indices = @transform_5, window_bounds = array<i64: 64, 128>}]} {
    %c0 = arith.constant 0 : index
    %0 = memref.load %arg1[%c0] : memref<2xf32, #tpu.memory_space<smem>>
    %c1 = arith.constant 1 : index
    %1 = memref.load %arg1[%c1] : memref<2xf32, #tpu.memory_space<smem>>
    %c0_0 = arith.constant 0 : index
    %c0_1 = arith.constant 0 : index
    %2 = vector.load %arg2[%c0_0, %c0_1] : memref<64x1xf32, #tpu.memory_space<vmem>>, vector<64x1xf32>
    %c0_2 = arith.constant 0 : index
    %c0_3 = arith.constant 0 : index
    %3 = vector.load %arg3[%c0_2, %c0_3] : memref<1x128xf32, #tpu.memory_space<vmem>>, vector<1x128xf32>
    %4 = vector.broadcast %2 : vector<64x1xf32> to vector<64x128xf32>
    %5 = vector.broadcast %3 : vector<1x128xf32> to vector<64x128xf32>
    %6 = arith.addf %4, %5 : vector<64x128xf32>
    %c0_4 = arith.constant 0 : index
    %c0_5 = arith.constant 0 : index
    %7 = vector.load %arg4[%c0_4, %c0_5] : memref<64x128xi8, #tpu.memory_space<vmem>>, vector<64x128xi8>
    %c0_i8 = arith.constant 0 : i8
    %8 = vector.broadcast %c0_i8 : i8 to vector<64x128xi8>
    %9 = arith.cmpi ne, %7, %8 : vector<64x128xi8>
    %10 = vector.broadcast %0 : f32 to vector<64x128xf32>
    %11 = arith.subf %6, %10 : vector<64x128xf32>
    %12 = vector.broadcast %1 : f32 to vector<64x128xf32>
    %13 = arith.mulf %11, %12 : vector<64x128xf32>
    %14 = math.exp %13 : vector<64x128xf32>
    %cst = arith.constant 0.000000e+00 : f32
    %15 = vector.broadcast %cst : f32 to vector<64x128xf32>
    %16 = arith.select %9, %14, %15 : vector<64x128xi1>, vector<64x128xf32>
    %17 = arith.truncf %16 : vector<64x128xf32> to vector<64x128xbf16>
    %c0_6 = arith.constant 0 : index
    %c0_7 = arith.constant 0 : index
    %18 = vector.load %arg5[%c0_6, %c0_7] : memref<128x128xbf16, #tpu.memory_space<vmem>>, vector<128x128xbf16>
    %cst_8 = arith.constant dense<0.000000e+00> : vector<64x128xf32>
    %19 = tpu.matmul %17, %18, %cst_8 {dimension_numbers = #tpu.dot_dimension_numbers<[1], [0], [0], [1], [0, 0, 1, 1], [], []>} : vector<64x128xbf16>, vector<128x128xbf16>, vector<64x128xf32> -> vector<64x128xf32>
    %20 = vector.extract_strided_slice %19 {offsets = [0, 64], sizes = [64, 1], strides = [1, 1]} : vector<64x128xf32> to vector<64x1xf32>
    %cst_9 = arith.constant 9.99999968E-21 : f32
    %21 = vector.broadcast %cst_9 : f32 to vector<64x1xf32>
    %22 = arith.maximumf %20, %21 : vector<64x1xf32>
    %23 = tpu.reciprocal %22 {approx = true} : vector<64x1xf32> -> vector<64x1xf32>
    %24 = vector.broadcast %23 : vector<64x1xf32> to vector<64x128xf32>
    %25 = arith.mulf %19, %24 : vector<64x128xf32>
    %26 = arith.truncf %25 : vector<64x128xf32> to vector<64x128xbf16>
    %c0_10 = arith.constant 0 : index
    %c0_11 = arith.constant 0 : index
    %27 = vector.load %arg6[%c0_10, %c0_11] : memref<64x128xbf16, #tpu.memory_space<vmem>>, vector<64x128xbf16>
    tpu.vector_store %arg6[%c0_10, %c0_11], %26 {strides = array<i32>} : memref<64x128xbf16, #tpu.memory_space<vmem>>, vector<64x128xbf16>,
    return
  }
  func.func @transform_0(%arg0: i32) -> i32 {
    %c0_i32 = arith.constant 0 : i32
    %c0_i32_0 = arith.constant 0 : i32
    return %c0_i32 : i32
  }
  func.func @transform_1(%arg0: i32) -> (i32, i32) {
    %c0_i32 = arith.constant 0 : i32
    %c0_i32_0 = arith.constant 0 : i32
    return %arg0, %c0_i32 : i32, i32
  }
  func.func @transform_2(%arg0: i32) -> (i32, i32) {
    %c0_i32 = arith.constant 0 : i32
    %c0_i32_0 = arith.constant 0 : i32
    %c0_i32_1 = arith.constant 0 : i32
    return %c0_i32, %c0_i32_0 : i32, i32
  }
  func.func @transform_3(%arg0: i32) -> (i32, i32) {
    %c0_i32 = arith.constant 0 : i32
    %c0_i32_0 = arith.constant 0 : i32
    return %arg0, %c0_i32 : i32, i32
  }
  func.func @transform_4(%arg0: i32) -> (i32, i32) {
    %c0_i32 = arith.constant 0 : i32
    %c0_i32_0 = arith.constant 0 : i32
    %c0_i32_1 = arith.constant 0 : i32
    return %c0_i32, %c0_i32_0 : i32, i32
  }
  func.func @transform_5(%arg0: i32) -> (i32, i32) {
    %c0_i32 = arith.constant 0 : i32
    %c0_i32_0 = arith.constant 0 : i32
    return %arg0, %c0_i32 : i32, i32
  }
}

</mosaic_0001>

<llo_original>
// kernel: gatv2_conv_multi.4
$region0: #{gatv2_conv_multi.4}
  #allocation0 [shape = 'u32[]', space=smem, size = 0x4, offset = 0x4, fixed_abs, tag = 'smem constant byte address 0x4 - core index']
  #allocation1 [shape = 'u32[72,128]{1,0:T(1,128)}', space=vmem, size = 0x9000, scoped, tag = 'internal scratch']
  %s0 = inlined_call_operand.vmem [shape: f32[128,1], index: 0, kind: input, shape index: {}]
  %s1 = inlined_call_operand.vmem [shape: f32[1,128], index: 1, kind: input, shape index: {}]
  %s2 = inlined_call_operand.vmem [shape: s8[128,128], index: 2, kind: input, shape index: {}]
  %s3 = inlined_call_operand.vmem [shape: f32[2,128], index: 3, kind: output, shape index: {}]
  %s4 = sld [smem:[#allocation0]]
  $region49: #{gatv2_conv_multi.4} parent=0
    _
  %s6 = ssub.s32 1, %s4
  %s7 = scalar_select 0, %s6, %s4
  loop: start=0, step=1, limit=4
  $region2: #{gatv2_conv_multi.4} parent=0 // loop_pre_header
    _
  $region3: #{gatv2_conv_multi.4} parent=0 // loop_header
    %s9 = sphi 0, %s13
    %p10 = scmp.ge.s32.totalorder %s9, 4
    %s19 = sphi 0, %s21
    %s22 = sphi 0, %s19
    %s23 = sphi 0, %s22
    %s39 = sphi 0, %s23
    %s43 = sphi 0, %s43
    %s45 = sphi 0, %s43
    %s46 = sphi 0, %s45
    %s60 = sphi 0, %s46
    %s66 = sphi 0, %s68
    %s69 = sphi 0, %s66
    %s70 = sphi 0, %s69
    %s86 = sphi 0, %s70
    %s90 = sphi 0, %s90
    %s92 = sphi 0, %s90
    %s93 = sphi 0, %s92
    %s107 = sphi 0, %s93
  $region4: #{gatv2_conv_multi.4} parent=0 // loop_header_branch
    %12 = sbr.rel (%p10) target = $region8
  $region5: #{gatv2_conv_multi.4} parent=0 // loop_body
    %s14 = ssub.s32 %s9, 1
    %s15 = ssub.s32 %s9, 2
    %s16 = sadd.s32 %s9, 1
    %s17 = ssub.s32 %s9, %s16
    %p18 = scmp.eq.s32.totalorder %s17, 0
    %s20 = sadd.s32 %s19, 1
    %s21 = scalar_select %p18, %s19, %s20
    %p24 = pneg %p18
    %p25 = scmp.eq.s32.totalorder %s9, 1
    %p26 = por %p24, %p25
    %p27 = scmp.ne.s32.totalorder %s19, %s22
    %p28 = scmp.eq.s32.totalorder %s9, 0
    %p29 = por %p27, %p28
    %p30 = scmp.ne.s32.totalorder %s19, %s22
    %p31 = scmp.eq.s32.totalorder %s14, 1
    %p32 = por %p30, %p31
    %p33 = scmp.ne.s32.totalorder %s22, %s23
    %p34 = scmp.eq.s32.totalorder %s14, 0
    %p35 = por %p33, %p34
    %p36 = scmp.ne.s32.totalorder %s22, %s23
    %p37 = scmp.eq.s32.totalorder %s15, 1
    %p38 = por %p36, %p37
    %p40 = scmp.ne.s32.totalorder %s23, %s39
    %p41 = scmp.eq.s32.totalorder %s15, 0
    %p42 = por %p40, %p41
    %s44 = sadd.s32 %s43, 1
    %p47 = scmp.eq.s32.totalorder %s9, 1
    %p48 = scmp.ne.s32.totalorder %s43, %s45
    %p49 = scmp.eq.s32.totalorder %s9, 0
    %p50 = por %p48, %p49
    %p51 = scmp.ne.s32.totalorder %s43, %s45
    %p52 = scmp.eq.s32.totalorder %s14, 1
    %p53 = por %p51, %p52
    %p54 = scmp.ne.s32.totalorder %s45, %s46
    %p55 = scmp.eq.s32.totalorder %s14, 0
    %p56 = por %p54, %p55
    %p57 = scmp.ne.s32.totalorder %s45, %s46
    %p58 = scmp.eq.s32.totalorder %s15, 1
    %p59 = por %p57, %p58
    %p61 = scmp.ne.s32.totalorder %s46, %s60
    %p62 = scmp.eq.s32.totalorder %s15, 0
    %p63 = por %p61, %p62
    %s64 = ssub.s32 %s9, %s16
    %p65 = scmp.eq.s32.totalorder %s64, 0
    %s67 = sadd.s32 %s66, 1
    %s68 = scalar_select %p65, %s66, %s67
    %p71 = pneg %p65
    %p72 = scmp.eq.s32.totalorder %s9, 1
    %p73 = por %p71, %p72
    %p74 = scmp.ne.s32.totalorder %s66, %s69
    %p75 = scmp.eq.s32.totalorder %s9, 0
    %p76 = por %p74, %p75
    %p77 = scmp.ne.s32.totalorder %s66, %s69
    %p78 = scmp.eq.s32.totalorder %s14, 1
    %p79 = por %p77, %p78
    %p80 = scmp.ne.s32.totalorder %s69, %s70
    %p81 = scmp.eq.s32.totalorder %s14, 0
    %p82 = por %p80, %p81
    %p83 = scmp.ne.s32.totalorder %s69, %s70
    %p84 = scmp.eq.s32.totalorder %s15, 1
    %p85 = por %p83, %p84
    %p87 = scmp.ne.s32.totalorder %s70, %s86
    %p88 = scmp.eq.s32.totalorder %s15, 0
    %p89 = por %p87, %p88
    %s91 = sadd.s32 %s90, 1
    %p94 = scmp.eq.s32.totalorder %s9, 1
    %p95 = scmp.ne.s32.totalorder %s90, %s92
    %p96 = scmp.eq.s32.totalorder %s9, 0
    %p97 = por %p95, %p96
    %p98 = scmp.ne.s32.totalorder %s90, %s92
    %p99 = scmp.eq.s32.totalorder %s14, 1
    %p100 = por %p98, %p99
    %p101 = scmp.ne.s32.totalorder %s92, %s93
    %p102 = scmp.eq.s32.totalorder %s14, 0
    %p103 = por %p101, %p102
    %p104 = scmp.ne.s32.totalorder %s92, %s93
    %p105 = scmp.eq.s32.totalorder %s15, 1
    %p106 = por %p104, %p105
    %p108 = scmp.ne.s32.totalorder %s93, %s107
    %p109 = scmp.eq.s32.totalorder %s15, 0
    %p110 = por %p108, %p109
    %p111 = scmp.le.s32.totalorder 1, %s9
    %p112 = scmp.lt.s32.totalorder %s9, 3
    %p113 = pnand %p111, %p112
    %p114 = pneg %p113
    // Predicated region
    $region9: #{gatv2_conv_multi.4} parent=5 // pred_check
      _
    $region10: #{gatv2_conv_multi.4} parent=5 // pred_check_branch
      %116 = sbr.rel (%p113) target = $region12
    $region11: #{gatv2_conv_multi.4} parent=5 // pred_region
      %s117 = ssub.s32 %s9, 1
      // Predicated region
      $region13: #{gatv2_conv_multi.4} parent=11 // pred_check
        %p118 = pneg %p56
      $region14: #{gatv2_conv_multi.4} parent=11 // pred_check_branch
        %120 = sbr.rel (%p118) target = $region16
      $region15: #{gatv2_conv_multi.4} parent=11 // pred_region
        _
      $region16: #{gatv2_conv_multi.4} parent=11 // pred_fallthru
        _
    $region12: #{gatv2_conv_multi.4} parent=5 // pred_fallthru
      _
    %p121 = scmp.lt.s32.totalorder %s9, 2
    // Predicated region
    $region17: #{gatv2_conv_multi.4} parent=5 // pred_check
      %p122 = pneg %p121
    $region18: #{gatv2_conv_multi.4} parent=5 // pred_check_branch
      %124 = sbr.rel (%p122) target = $region20
    $region19: #{gatv2_conv_multi.4} parent=5 // pred_region
      // Predicated region
      $region21: #{gatv2_conv_multi.4} parent=19 // pred_check
        %p125 = pneg %p29
      $region22: #{gatv2_conv_multi.4} parent=19 // pred_check_branch
        %127 = sbr.rel (%p125) target = $region24
      $region23: #{gatv2_conv_multi.4} parent=19 // pred_region
        %s128 = smul.u32 8, %s9
        %p129 = scmp.lt.s32.totalorder %s128, 15
        %s130 = scalar_select %p129, %s128, 15
        %s131 = smul.addr %s130, 8
        %s132 = scalar_lea.vmem %s0, %s131
        %s133 = smul.u32 8, %s9
      $region24: #{gatv2_conv_multi.4} parent=19 // pred_fallthru
        _
      // Predicated region
      $region25: #{gatv2_conv_multi.4} parent=19 // pred_check
        %p134 = pneg %p76
      $region26: #{gatv2_conv_multi.4} parent=19 // pred_check_branch
        %136 = sbr.rel (%p134) target = $region28
      $region27: #{gatv2_conv_multi.4} parent=19 // pred_region
        %s137 = smul.u32 2, %s9
        %p138 = scmp.lt.s32.totalorder %s137, 3
        %s139 = scalar_select %p138, %s137, 3
        %s140 = smul.addr %s139, 8
        %s141 = scalar_lea.vmem %s2, %s140
        %s142 = smul.u32 2, %s9
      $region28: #{gatv2_conv_multi.4} parent=19 // pred_fallthru
        _
    $region20: #{gatv2_conv_multi.4} parent=5 // pred_fallthru
      _
    %p143 = scmp.le.s32.totalorder 1, %s9
    %p144 = scmp.lt.s32.totalorder %s9, 3
    %p145 = pnand %p143, %p144
    %p146 = pneg %p145
    // Predicated region
    $region29: #{gatv2_conv_multi.4} parent=5 // pred_check
      _
    $region30: #{gatv2_conv_multi.4} parent=5 // pred_check_branch
      %148 = sbr.rel (%p145) target = $region32
    $region31: #{gatv2_conv_multi.4} parent=5 // pred_region
      %s149 = ssub.s32 %s9, 1
      %s150 = smul.u32 8, %s14
      %p151 = scmp.lt.s32.totalorder %s150, 15
      %s152 = scalar_select %p151, %s150, 15
      %s153 = smul.addr %s152, 8
      %s154 = scalar_lea.vmem %s0, %s153
      %p155 = pneg %p35
      %p156 = pneg %p32
      %p157 = pneg %p56
      %p158 = pneg %p53
      %s159 = smul.u32 2, %s14
      %p160 = scmp.lt.s32.totalorder %s159, 3
      %s161 = scalar_select %p160, %s159, 3
      %s162 = smul.addr %s161, 8
      %s163 = scalar_lea.vmem %s2, %s162
      %p164 = pneg %p82
      %p165 = pneg %p79
      %p166 = pneg %p103
      %p167 = pneg %p100
      %s168 = smul.u32 8, %s14
      %p169 = scmp.lt.s32.totalorder %s168, 15
      %s170 = scalar_select %p169, %s168, 15
      %s171 = smul.addr %s170, 8
      %s172 = scalar_lea.vmem %s0, %s171
      %s173 = smul.u32 8, %s14
      %s174 = smul.u32 2, %s14
      %p175 = scmp.lt.s32.totalorder %s174, 3
      %s176 = scalar_select %p175, %s174, 3
      %s177 = smul.addr %s176, 8
      %s178 = scalar_lea.vmem %s2, %s177
      %s179 = smul.u32 2, %s14
      %p182 = scmp.eq.s32.totalorder %s14, 0
      // Predicated region
      $region33: #{gatv2_conv_multi.4} parent=31 // pred_check
        %p183 = pneg %p182
      $region34: #{gatv2_conv_multi.4} parent=31 // pred_check_branch
        %185 = sbr.rel (%p183) target = $region36
      $region35: #{gatv2_conv_multi.4} parent=31 // pred_region
        %186 = vst [vmem:[%s3] sm:$0x3] -inf
      $region36: #{gatv2_conv_multi.4} parent=31 // pred_fallthru
        _
      %v187 = vld [vmem:[%s172] sm:$0xff]
      %v188 = vld [vmem:[%s172 + $0x8] sm:$0xff]
      %v189 = vld [vmem:[%s172 + $0x10] sm:$0xff]
      %v190 = vld [vmem:[%s172 + $0x18] sm:$0xff]
      %v191 = vld [vmem:[%s172 + $0x20] sm:$0xff]
      %v192 = vld [vmem:[%s172 + $0x28] sm:$0xff]
      %v193 = vld [vmem:[%s172 + $0x30] sm:$0xff]
      %v194 = vld [vmem:[%s172 + $0x38] sm:$0xff]
      %v195 = vld [vmem:[%s1] sm:$0x1]
      %197 = vset.pattern.permute.xlu0 0
      %198 = vperm.xlu0 %197, %v187
      %v199 = vpop.permute.xlu0 %198
      %202 = vset.pattern.permute.xlu0 0
      %203 = vperm.xlu0 %202, %v188
      %v204 = vpop.permute.xlu0 %203
      %207 = vset.pattern.permute.xlu0 0
      %208 = vperm.xlu0 %207, %v189
      %v209 = vpop.permute.xlu0 %208
      %212 = vset.pattern.permute.xlu0 0
      %213 = vperm.xlu0 %212, %v190
      %v214 = vpop.permute.xlu0 %213
      %217 = vset.pattern.permute.xlu0 0
      %218 = vperm.xlu0 %217, %v191
      %v219 = vpop.permute.xlu0 %218
      %222 = vset.pattern.permute.xlu0 0
      %223 = vperm.xlu0 %222, %v192
      %v224 = vpop.permute.xlu0 %223
      %227 = vset.pattern.permute.xlu0 0
      %228 = vperm.xlu0 %227, %v193
      %v229 = vpop.permute.xlu0 %228
      %232 = vset.pattern.permute.xlu0 0
      %233 = vperm.xlu0 %232, %v194
      %v234 = vpop.permute.xlu0 %233
      %v237 = vperm.slane %v195, 0
      %v239 = vadd.f32 %v199, %v237
      %v240 = vadd.f32 %v204, %v237
      %v241 = vadd.f32 %v209, %v237
      %v242 = vadd.f32 %v214, %v237
      %v243 = vadd.f32 %v219, %v237
      %v244 = vadd.f32 %v224, %v237
      %v245 = vadd.f32 %v229, %v237
      %v246 = vadd.f32 %v234, %v237
      %v247 = vld [vmem:[%s178] sm:$0xff]
      %v248 = vld [vmem:[%s178 + $0x8] sm:$0xff]
      %vm249 = vnez %v247
      %vm250 = vnez %v248
      %v251 = vsel %vm249, 16843009, 0
      %v252 = vsel %vm250, 16843009, 0
      %v253 = vunpack.c.0.s8 %v251
      %v254 = vunpack.c.1.s8 %v251
      %v255 = vunpack.c.2.s8 %v251
      %v256 = vunpack.c.3.s8 %v251
      %v257 = vunpack.c.0.s8 %v252
      %v258 = vunpack.c.1.s8 %v252
      %v259 = vunpack.c.2.s8 %v252
      %v260 = vunpack.c.3.s8 %v252
      %v261 = vpack.c.b16 %v253, %v253
      %v262 = vpack.c.b8 %v261, %v261
      %v263 = vpack.c.b16 %v254, %v254
      %v264 = vpack.c.b8 %v263, %v263
      %v265 = vpack.c.b16 %v255, %v255
      %v266 = vpack.c.b8 %v265, %v265
      %v267 = vpack.c.b16 %v256, %v256
      %v268 = vpack.c.b8 %v267, %v267
      %v269 = vpack.c.b16 %v257, %v257
      %v270 = vpack.c.b8 %v269, %v269
      %v271 = vpack.c.b16 %v258, %v258
      %v272 = vpack.c.b8 %v271, %v271
      %v273 = vpack.c.b16 %v259, %v259
      %v274 = vpack.c.b8 %v273, %v273
      %v275 = vpack.c.b16 %v260, %v260
      %v276 = vpack.c.b8 %v275, %v275
      %vm277 = vnez %v262
      %vm278 = vnez %v264
      %vm279 = vnez %v266
      %vm280 = vnez %v268
      %vm281 = vnez %v270
      %vm282 = vnez %v272
      %vm283 = vnez %v274
      %vm284 = vnez %v276
      %v285 = vsel %vm277, 16843009, 0
      %v286 = vsel %vm278, 16843009, 0
      %v287 = vsel %vm279, 16843009, 0
      %v288 = vsel %vm280, 16843009, 0
      %v289 = vsel %vm281, 16843009, 0
      %v290 = vsel %vm282, 16843009, 0
      %v291 = vsel %vm283, 16843009, 0
      %v292 = vsel %vm284, 16843009, 0
      %v293 = vunpack.c.0.s8 %v285
      %v294 = vunpack.c.0.s8 %v286
      %v295 = vunpack.c.0.s8 %v287
      %v296 = vunpack.c.0.s8 %v288
      %v297 = vunpack.c.0.s8 %v289
      %v298 = vunpack.c.0.s8 %v290
      %v299 = vunpack.c.0.s8 %v291
      %v300 = vunpack.c.0.s8 %v292
      %vm301 = vcmp.ne.s32.totalorder %v293, 0
      %vm302 = vcmp.ne.s32.totalorder %v294, 0
      %vm303 = vcmp.ne.s32.totalorder %v295, 0
      %vm304 = vcmp.ne.s32.totalorder %v296, 0
      %vm305 = vcmp.ne.s32.totalorder %v297, 0
      %vm306 = vcmp.ne.s32.totalorder %v298, 0
      %vm307 = vcmp.ne.s32.totalorder %v299, 0
      %vm308 = vcmp.ne.s32.totalorder %v300, 0
      %v309 = vsel %vm301, %v239, -inf
      %v310 = vsel %vm302, %v240, -inf
      %v311 = vsel %vm303, %v241, -inf
      %v312 = vsel %vm304, %v242, -inf
      %v313 = vsel %vm305, %v243, -inf
      %v314 = vsel %vm306, %v244, -inf
      %v315 = vsel %vm307, %v245, -inf
      %v316 = vsel %vm308, %v246, -inf
      %v317 = vmax.f32 %v309, %v313
      %v318 = vmax.f32 %v310, %v314
      %v319 = vmax.f32 %v311, %v315
      %v320 = vmax.f32 %v312, %v316
      %v321 = vmax.f32 %v317, %v318
      %v322 = vmax.f32 %v319, %v320
      %v323 = vmax.f32 %v321, %v322
      %v324 = vrot.slane %v323, 4
      %v325 = vmax.f32 %v323, %v324
      %v326 = vrot.slane %v325, 2
      %v327 = vmax.f32 %v325, %v326
      %v328 = vrot.slane %v327, 1
      %v329 = vmax.f32 %v327, %v328
      %v330 = vsub.f32 0.0, %v239
      %v331 = vsub.f32 0.0, %v240
      %v332 = vsub.f32 0.0, %v241
      %v333 = vsub.f32 0.0, %v242
      %v334 = vsub.f32 0.0, %v243
      %v335 = vsub.f32 0.0, %v244
      %v336 = vsub.f32 0.0, %v245
      %v337 = vsub.f32 0.0, %v246
      %v338 = vsel %vm301, %v330, -inf
      %v339 = vsel %vm302, %v331, -inf
      %v340 = vsel %vm303, %v332, -inf
      %v341 = vsel %vm304, %v333, -inf
      %v342 = vsel %vm305, %v334, -inf
      %v343 = vsel %vm306, %v335, -inf
      %v344 = vsel %vm307, %v336, -inf
      %v345 = vsel %vm308, %v337, -inf
      %v346 = vmax.f32 %v338, %v342
      %v347 = vmax.f32 %v339, %v343
      %v348 = vmax.f32 %v340, %v344
      %v349 = vmax.f32 %v341, %v345
      %v350 = vmax.f32 %v346, %v347
      %v351 = vmax.f32 %v348, %v349
      %v352 = vmax.f32 %v350, %v351
      %v353 = vrot.slane %v352, 4
      %v354 = vmax.f32 %v352, %v353
      %v355 = vrot.slane %v354, 2
      %v356 = vmax.f32 %v354, %v355
      %v357 = vrot.slane %v356, 1
      %v358 = vmax.f32 %v356, %v357
      %v359 = vld [vmem:[%s3] sm:$0x3]
      %vm360 = vcmask 1040384
      %v361 = vsel %vm360, %v329, %v358
      %v362 = vmax.f32 %v359, %v361
      %363 = vst [vmem:[%s3] sm:$0x3] %v362
      // Predicated region
      $region37: #{gatv2_conv_multi.4} parent=31 // pred_check
        %p364 = pneg %p100
      $region38: #{gatv2_conv_multi.4} parent=31 // pred_check_branch
        %366 = sbr.rel (%p364) target = $region40
      $region39: #{gatv2_conv_multi.4} parent=31 // pred_region
        _
      $region40: #{gatv2_conv_multi.4} parent=31 // pred_fallthru
        _
      // Predicated region
      $region41: #{gatv2_conv_multi.4} parent=31 // pred_check
        %p367 = pneg %p100
      $region42: #{gatv2_conv_multi.4} parent=31 // pred_check_branch
        %369 = sbr.rel (%p367) target = $region44
      $region43: #{gatv2_conv_multi.4} parent=31 // pred_region
        _
      $region44: #{gatv2_conv_multi.4} parent=31 // pred_fallthru
        _
    $region32: #{gatv2_conv_multi.4} parent=5 // pred_fallthru
      _
    %p370 = scmp.le.s32.totalorder 2, %s9
    // Predicated region
    $region45: #{gatv2_conv_multi.4} parent=5 // pred_check
      %p371 = pneg %p370
    $region46: #{gatv2_conv_multi.4} parent=5 // pred_check_branch
      %373 = sbr.rel (%p371) target = $region48
    $region47: #{gatv2_conv_multi.4} parent=5 // pred_region
      %s374 = ssub.s32 %s9, 2
    $region48: #{gatv2_conv_multi.4} parent=5 // pred_fallthru
      _
  $region6: #{gatv2_conv_multi.4} parent=0 // loop_footer
    %s13 = sadd.s32 1, %s9
  $region7: #{gatv2_conv_multi.4} parent=0 // loop_footer_branch
    %8 = sbr.rel target = $region3
  $region8: #{gatv2_conv_multi.4} parent=0 // loop_exit
    _

// kernel: gatv2_conv_multi.3
$region0: #{gatv2_conv_multi.3}
  #allocation0 [shape = 'u32[]', space=smem, size = 0x4, offset = 0x4, fixed_abs, tag = 'smem constant byte address 0x4 - core index']
  #allocation1 [shape = 'u32[72,128]{1,0:T(1,128)}', space=vmem, size = 0x9000, scoped, tag = 'internal scratch']
  %s0 = inlined_call_operand.vmem [shape: bf16[128,64], index: 0, kind: input, shape index: {}]
  %s1 = inlined_call_operand.vmem [shape: bf16[64,128], index: 1, kind: input, shape index: {}]
  %s2 = inlined_call_operand.vmem [shape: bf16[1,64], index: 2, kind: input, shape index: {}]
  %s3 = inlined_call_operand.vmem [shape: bf16[128,128], index: 3, kind: output, shape index: {0}]
  %s4 = inlined_call_operand.vmem [shape: f32[128,1], index: 4, kind: output, shape index: {1}]
  %s5 = inlined_call_operand.vmem [shape: f32[1,128], index: 5, kind: output, shape index: {2}]
  %6 = xla_tuple %s3, %s4, %s5
  %s7 = sld [smem:[#allocation0]]
  $region38: #{gatv2_conv_multi.3} parent=0
    _
  %s9 = ssub.s32 1, %s7
  %s10 = scalar_select 0, %s9, %s7
  // Predicated region
  $region2: #{gatv2_conv_multi.3} parent=0 // pred_check
    _
  $region3: #{gatv2_conv_multi.3} parent=0 // pred_check_branch
    %12 = sbr.rel (0) target = $region5
  $region4: #{gatv2_conv_multi.3} parent=0 // pred_region
    _
  $region5: #{gatv2_conv_multi.3} parent=0 // pred_fallthru
    _
  // Predicated region
  $region6: #{gatv2_conv_multi.3} parent=0 // pred_check
    _
  $region7: #{gatv2_conv_multi.3} parent=0 // pred_check_branch
    %14 = sbr.rel (0) target = $region9
  $region8: #{gatv2_conv_multi.3} parent=0 // pred_region
    _
  $region9: #{gatv2_conv_multi.3} parent=0 // pred_fallthru
    _
  // Predicated region
  $region10: #{gatv2_conv_multi.3} parent=0 // pred_check
    _
  $region11: #{gatv2_conv_multi.3} parent=0 // pred_check_branch
    %16 = sbr.rel (0) target = $region13
  $region12: #{gatv2_conv_multi.3} parent=0 // pred_region
    _
  $region13: #{gatv2_conv_multi.3} parent=0 // pred_fallthru
    _
  %v18 = vld [vmem:[%s0] sm:$0xf]
  %v19 = vld [vmem:[%s0 + $0x4] sm:$0xf]
  %v20 = vld [vmem:[%s0 + $0x8] sm:$0xf]
  %v21 = vld [vmem:[%s0 + $0xc] sm:$0xf]
  %v22 = vld [vmem:[%s0 + $0x10] sm:$0xf]
  %v23 = vld [vmem:[%s0 + $0x14] sm:$0xf]
  %v24 = vld [vmem:[%s0 + $0x18] sm:$0xf]
  %v25 = vld [vmem:[%s0 + $0x1c] sm:$0xf]
  %v26 = vld [vmem:[%s0 + $0x20] sm:$0xf]
  %v27 = vld [vmem:[%s0 + $0x24] sm:$0xf]
  %v28 = vld [vmem:[%s0 + $0x28] sm:$0xf]
  %v29 = vld [vmem:[%s0 + $0x2c] sm:$0xf]
  %v30 = vld [vmem:[%s0 + $0x30] sm:$0xf]
  %v31 = vld [vmem:[%s0 + $0x34] sm:$0xf]
  %v32 = vld [vmem:[%s0 + $0x38] sm:$0xf]
  %v33 = vld [vmem:[%s0 + $0x3c] sm:$0xf]
  %v34 = vld [vmem:[%s1] sm:$0xf]
  %v35 = vld [vmem:[%s1 + $0x4] sm:$0xf]
  %v36 = vld [vmem:[%s1 + $0x8] sm:$0xf]
  %v37 = vld [vmem:[%s1 + $0xc] sm:$0xf]
  %v38 = vld [vmem:[%s1 + $0x10] sm:$0xf]
  %v39 = vld [vmem:[%s1 + $0x14] sm:$0xf]
  %v40 = vld [vmem:[%s1 + $0x18] sm:$0xf]
  %v41 = vld [vmem:[%s1 + $0x1c] sm:$0xf]
  %v58 = vunpack.c.l.b16 %v18
  %v59 = vunpack.c.l.b16 %v19
  %v60 = vunpack.c.l.b16 %v20
  %v61 = vunpack.c.l.b16 %v21
  %v62 = vunpack.c.l.b16 %v22
  %v63 = vunpack.c.l.b16 %v23
  %v64 = vunpack.c.l.b16 %v24
  %v65 = vunpack.c.l.b16 %v25
  %v66 = vunpack.c.l.b16 %v26
  %v67 = vunpack.c.l.b16 %v27
  %v68 = vunpack.c.l.b16 %v28
  %v69 = vunpack.c.l.b16 %v29
  %v70 = vunpack.c.l.b16 %v30
  %v71 = vunpack.c.l.b16 %v31
  %v72 = vunpack.c.l.b16 %v32
  %v73 = vunpack.c.l.b16 %v33
  %v74 = vpack.c.b16 %v59, %v58
  %v75 = vpack.c.b16 %v61, %v60
  %v76 = vpack.c.b16 %v63, %v62
  %v77 = vpack.c.b16 %v65, %v64
  %v78 = vpack.c.b16 %v67, %v66
  %v79 = vpack.c.b16 %v69, %v68
  %v80 = vpack.c.b16 %v71, %v70
  %v81 = vpack.c.b16 %v73, %v72
  %v90 = vunpack.c.l.b16 %v34
  %v91 = vunpack.c.l.b16 %v35
  %v92 = vunpack.c.l.b16 %v36
  %v93 = vunpack.c.l.b16 %v37
  %v94 = vunpack.c.l.b16 %v38
  %v95 = vunpack.c.l.b16 %v39
  %v96 = vunpack.c.l.b16 %v40
  %v97 = vunpack.c.l.b16 %v41
  %v98 = vpack.c.b16 %v91, %v90
  %v99 = vpack.c.b16 %v93, %v92
  %v100 = vpack.c.b16 %v95, %v94
  %v101 = vpack.c.b16 %v97, %v96
  %vm106 = vcmask 523264
  %v108 = vsel %vm106, %v74, 0
  %v111 = vsel %vm106, %v75, 0
  %v114 = vsel %vm106, %v76, 0
  %v117 = vsel %vm106, %v77, 0
  %v120 = vsel %vm106, %v78, 0
  %v123 = vsel %vm106, %v79, 0
  %v126 = vsel %vm106, %v80, 0
  %v129 = vsel %vm106, %v81, 0
  %131 = vmatpush.bf16.msra.mxu0 0
  %132 = vmatpush.bf16.msra.mxu0 0
  %133 = vmatpush.bf16.msra.mxu0 0
  %134 = vmatpush.bf16.msra.mxu0 0
  %135 = vmatpush.bf16.msra.mxu0 %v101
  %136 = vmatpush.bf16.msra.mxu0 %v100
  %137 = vmatpush.bf16.msra.mxu0 %v99
  %138 = vmatpush.bf16.msra.mxu0 %v98
  %139 = vmatmul.bf16.gmra.mxu0 %v108
  %v140 = vpop.f32.mrf.mxu0
  %v141 = vadd.f32 0.0, %v140
  %v142 = vpop.f32.mrf.mxu0
  %v143 = vadd.f32 0.0, %v142
  %144 = vmatmul.bf16.gmra.mxu0 %v111
  %v145 = vpop.f32.mrf.mxu0
  %v146 = vadd.f32 0.0, %v145
  %v147 = vpop.f32.mrf.mxu0
  %v148 = vadd.f32 0.0, %v147
  %149 = vmatmul.bf16.gmra.mxu0 %v114
  %v150 = vpop.f32.mrf.mxu0
  %v151 = vadd.f32 0.0, %v150
  %v152 = vpop.f32.mrf.mxu0
  %v153 = vadd.f32 0.0, %v152
  %154 = vmatmul.bf16.gmra.mxu0 %v117
  %v155 = vpop.f32.mrf.mxu0
  %v156 = vadd.f32 0.0, %v155
  %v157 = vpop.f32.mrf.mxu0
  %v158 = vadd.f32 0.0, %v157
  %159 = vmatmul.bf16.gmra.mxu0 %v120
  %v160 = vpop.f32.mrf.mxu0
  %v161 = vadd.f32 0.0, %v160
  %v162 = vpop.f32.mrf.mxu0
  %v163 = vadd.f32 0.0, %v162
  %164 = vmatmul.bf16.gmra.mxu0 %v123
  %v165 = vpop.f32.mrf.mxu0
  %v166 = vadd.f32 0.0, %v165
  %v167 = vpop.f32.mrf.mxu0
  %v168 = vadd.f32 0.0, %v167
  %169 = vmatmul.bf16.gmra.mxu0 %v126
  %v170 = vpop.f32.mrf.mxu0
  %v171 = vadd.f32 0.0, %v170
  %v172 = vpop.f32.mrf.mxu0
  %v173 = vadd.f32 0.0, %v172
  %174 = vmatmul.bf16.gmra.mxu0 %v129
  %v175 = vpop.f32.mrf.mxu0
  %v176 = vadd.f32 0.0, %v175
  %v177 = vpop.f32.mrf.mxu0
  %v178 = vadd.f32 0.0, %v177
  %179 = vdwg.mxu0
  %vm180 = vcmp.gt.f32.partialorder %v141, 0.0
  %vm181 = vcmp.gt.f32.partialorder %v143, 0.0
  %vm182 = vcmp.gt.f32.partialorder %v146, 0.0
  %vm183 = vcmp.gt.f32.partialorder %v148, 0.0
  %vm184 = vcmp.gt.f32.partialorder %v151, 0.0
  %vm185 = vcmp.gt.f32.partialorder %v153, 0.0
  %vm186 = vcmp.gt.f32.partialorder %v156, 0.0
  %vm187 = vcmp.gt.f32.partialorder %v158, 0.0
  %vm188 = vcmp.gt.f32.partialorder %v161, 0.0
  %vm189 = vcmp.gt.f32.partialorder %v163, 0.0
  %vm190 = vcmp.gt.f32.partialorder %v166, 0.0
  %vm191 = vcmp.gt.f32.partialorder %v168, 0.0
  %vm192 = vcmp.gt.f32.partialorder %v171, 0.0
  %vm193 = vcmp.gt.f32.partialorder %v173, 0.0
  %vm194 = vcmp.gt.f32.partialorder %v176, 0.0
  %vm195 = vcmp.gt.f32.partialorder %v178, 0.0
  %v196 = vmul.f32 %v141, 0.2
  %v197 = vmul.f32 %v143, 0.2
  %v198 = vmul.f32 %v146, 0.2
  %v199 = vmul.f32 %v148, 0.2
  %v200 = vmul.f32 %v151, 0.2
  %v201 = vmul.f32 %v153, 0.2
  %v202 = vmul.f32 %v156, 0.2
  %v203 = vmul.f32 %v158, 0.2
  %v204 = vmul.f32 %v161, 0.2
  %v205 = vmul.f32 %v163, 0.2
  %v206 = vmul.f32 %v166, 0.2
  %v207 = vmul.f32 %v168, 0.2
  %v208 = vmul.f32 %v171, 0.2
  %v209 = vmul.f32 %v173, 0.2
  %v210 = vmul.f32 %v176, 0.2
  %v211 = vmul.f32 %v178, 0.2
  %v212 = vsel %vm180, %v141, %v196
  %v213 = vsel %vm181, %v143, %v197
  %v214 = vsel %vm182, %v146, %v198
  %v215 = vsel %vm183, %v148, %v199
  %v216 = vsel %vm184, %v151, %v200
  %v217 = vsel %vm185, %v153, %v201
  %v218 = vsel %vm186, %v156, %v202
  %v219 = vsel %vm187, %v158, %v203
  %v220 = vsel %vm188, %v161, %v204
  %v221 = vsel %vm189, %v163, %v205
  %v222 = vsel %vm190, %v166, %v206
  %v223 = vsel %vm191, %v168, %v207
  %v224 = vsel %vm192, %v171, %v208
  %v225 = vsel %vm193, %v173, %v209
  %v226 = vsel %vm194, %v176, %v210
  %v227 = vsel %vm195, %v178, %v211
  %v228 = vld [vmem:[%s2] sm:$0x1]
  %v229 = vunpack.c.l.bf16 %v228
  %v230 = vperm.slane %v229, 0
  %v231 = vmul.f32 %v212, %v230
  %v232 = vmul.f32 %v213, %v230
  %v233 = vmul.f32 %v214, %v230
  %v234 = vmul.f32 %v215, %v230
  %v235 = vmul.f32 %v216, %v230
  %v236 = vmul.f32 %v217, %v230
  %v237 = vmul.f32 %v218, %v230
  %v238 = vmul.f32 %v219, %v230
  %v239 = vmul.f32 %v220, %v230
  %v240 = vmul.f32 %v221, %v230
  %v241 = vmul.f32 %v222, %v230
  %v242 = vmul.f32 %v223, %v230
  %v243 = vmul.f32 %v224, %v230
  %v244 = vmul.f32 %v225, %v230
  %v245 = vmul.f32 %v226, %v230
  %v246 = vmul.f32 %v227, %v230
  %v247 = vsel %vm106, %v231, 0.0
  %248 = vadd.xlane.f32.xlu0 %v247
  %v249 = vpop.xlane.xlu0 %248
  %v250 = vsel %vm106, %v232, 0.0
  %251 = vadd.xlane.f32.xlu0 %v250
  %v252 = vpop.xlane.xlu0 %251
  %v253 = vsel %vm106, %v233, 0.0
  %254 = vadd.xlane.f32.xlu0 %v253
  %v255 = vpop.xlane.xlu0 %254
  %v256 = vsel %vm106, %v234, 0.0
  %257 = vadd.xlane.f32.xlu0 %v256
  %v258 = vpop.xlane.xlu0 %257
  %v259 = vsel %vm106, %v235, 0.0
  %260 = vadd.xlane.f32.xlu0 %v259
  %v261 = vpop.xlane.xlu0 %260
  %v262 = vsel %vm106, %v236, 0.0
  %263 = vadd.xlane.f32.xlu0 %v262
  %v264 = vpop.xlane.xlu0 %263
  %v265 = vsel %vm106, %v237, 0.0
  %266 = vadd.xlane.f32.xlu0 %v265
  %v267 = vpop.xlane.xlu0 %266
  %v268 = vsel %vm106, %v238, 0.0
  %269 = vadd.xlane.f32.xlu0 %v268
  %v270 = vpop.xlane.xlu0 %269
  %v271 = vsel %vm106, %v239, 0.0
  %272 = vadd.xlane.f32.xlu0 %v271
  %v273 = vpop.xlane.xlu0 %272
  %v274 = vsel %vm106, %v240, 0.0
  %275 = vadd.xlane.f32.xlu0 %v274
  %v276 = vpop.xlane.xlu0 %275
  %v277 = vsel %vm106, %v241, 0.0
  %278 = vadd.xlane.f32.xlu0 %v277
  %v279 = vpop.xlane.xlu0 %278
  %v280 = vsel %vm106, %v242, 0.0
  %281 = vadd.xlane.f32.xlu0 %v280
  %v282 = vpop.xlane.xlu0 %281
  %v283 = vsel %vm106, %v243, 0.0
  %284 = vadd.xlane.f32.xlu0 %v283
  %v285 = vpop.xlane.xlu0 %284
  %v286 = vsel %vm106, %v244, 0.0
  %287 = vadd.xlane.f32.xlu0 %v286
  %v288 = vpop.xlane.xlu0 %287
  %v289 = vsel %vm106, %v245, 0.0
  %290 = vadd.xlane.f32.xlu0 %v289
  %v291 = vpop.xlane.xlu0 %290
  %v292 = vsel %vm106, %v246, 0.0
  %293 = vadd.xlane.f32.xlu0 %v292
  %v294 = vpop.xlane.xlu0 %293
  %vm295 = vcmask 7168
  %296 = vst.msk [vmem:[%s4] sm:$0xff] %vm295, %v249
  %297 = vst.msk [vmem:[%s4 + $0x8] sm:$0xff] %vm295, %v252
  %298 = vst.msk [vmem:[%s4 + $0x10] sm:$0xff] %vm295, %v255
  %299 = vst.msk [vmem:[%s4 + $0x18] sm:$0xff] %vm295, %v258
  %300 = vst.msk [vmem:[%s4 + $0x20] sm:$0xff] %vm295, %v261
  %301 = vst.msk [vmem:[%s4 + $0x28] sm:$0xff] %vm295, %v264
  %302 = vst.msk [vmem:[%s4 + $0x30] sm:$0xff] %vm295, %v267
  %303 = vst.msk [vmem:[%s4 + $0x38] sm:$0xff] %vm295, %v270
  %304 = vst.msk [vmem:[%s4 + $0x40] sm:$0xff] %vm295, %v273
  %305 = vst.msk [vmem:[%s4 + $0x48] sm:$0xff] %vm295, %v276
  %306 = vst.msk [vmem:[%s4 + $0x50] sm:$0xff] %vm295, %v279
  %307 = vst.msk [vmem:[%s4 + $0x58] sm:$0xff] %vm295, %v282
  %308 = vst.msk [vmem:[%s4 + $0x60] sm:$0xff] %vm295, %v285
  %309 = vst.msk [vmem:[%s4 + $0x68] sm:$0xff] %vm295, %v288
  %310 = vst.msk [vmem:[%s4 + $0x70] sm:$0xff] %vm295, %v291
  %311 = vst.msk [vmem:[%s4 + $0x78] sm:$0xff] %vm295, %v294
  %328 = vrot.lane.b32.xlu0 %v212, 64
  %v329 = vpop.permute.xlu0 %328
  %330 = vrot.lane.b32.xlu0 %v213, 64
  %v331 = vpop.permute.xlu0 %330
  %332 = vrot.lane.b32.xlu0 %v214, 64
  %v333 = vpop.permute.xlu0 %332
  %334 = vrot.lane.b32.xlu0 %v215, 64
  %v335 = vpop.permute.xlu0 %334
  %336 = vrot.lane.b32.xlu0 %v216, 64
  %v337 = vpop.permute.xlu0 %336
  %338 = vrot.lane.b32.xlu0 %v217, 64
  %v339 = vpop.permute.xlu0 %338
  %340 = vrot.lane.b32.xlu0 %v218, 64
  %v341 = vpop.permute.xlu0 %340
  %342 = vrot.lane.b32.xlu0 %v219, 64
  %v343 = vpop.permute.xlu0 %342
  %344 = vrot.lane.b32.xlu0 %v220, 64
  %v345 = vpop.permute.xlu0 %344
  %346 = vrot.lane.b32.xlu0 %v221, 64
  %v347 = vpop.permute.xlu0 %346
  %348 = vrot.lane.b32.xlu0 %v222, 64
  %v349 = vpop.permute.xlu0 %348
  %350 = vrot.lane.b32.xlu0 %v223, 64
  %v351 = vpop.permute.xlu0 %350
  %352 = vrot.lane.b32.xlu0 %v224, 64
  %v353 = vpop.permute.xlu0 %352
  %354 = vrot.lane.b32.xlu0 %v225, 64
  %v355 = vpop.permute.xlu0 %354
  %356 = vrot.lane.b32.xlu0 %v226, 64
  %v357 = vpop.permute.xlu0 %356
  %358 = vrot.lane.b32.xlu0 %v227, 64
  %v359 = vpop.permute.xlu0 %358
  %v361 = vsel %vm106, %v229, 0
  %v363 = vsel %vm106, %v329, 0
  %v365 = vsel %vm106, %v331, 0
  %v367 = vsel %vm106, %v333, 0
  %v369 = vsel %vm106, %v335, 0
  %v371 = vsel %vm106, %v337, 0
  %v373 = vsel %vm106, %v339, 0
  %v375 = vsel %vm106, %v341, 0
  %v377 = vsel %vm106, %v343, 0
  %v379 = vsel %vm106, %v345, 0
  %v381 = vsel %vm106, %v347, 0
  %v383 = vsel %vm106, %v349, 0
  %v385 = vsel %vm106, %v351, 0
  %v387 = vsel %vm106, %v353, 0
  %v389 = vsel %vm106, %v355, 0
  %v391 = vsel %vm106, %v357, 0
  %v393 = vsel %vm106, %v359, 0
  %395 = vmatpush.xpose.msra.mxu0 %v393
  %396 = vmatpush.xpose.msra.mxu0 %v391
  %397 = vmatpush.xpose.msra.mxu0 %v389
  %398 = vmatpush.xpose.msra.mxu0 %v387
  %399 = vmatpush.xpose.msra.mxu0 %v385
  %400 = vmatpush.xpose.msra.mxu0 %v383
  %401 = vmatpush.xpose.msra.mxu0 %v381
  %402 = vmatpush.xpose.msra.mxu0 %v379
  %403 = vmatpush.xpose.msra.mxu0 %v377
  %404 = vmatpush.xpose.msra.mxu0 %v375
  %405 = vmatpush.xpose.msra.mxu0 %v373
  %406 = vmatpush.xpose.msra.mxu0 %v371
  %407 = vmatpush.xpose.msra.mxu0 %v369
  %408 = vmatpush.xpose.msra.mxu0 %v367
  %409 = vmatpush.xpose.msra.mxu0 %v365
  %410 = vmatpush.xpose.msra.mxu0 %v363
  %411 = vmatmul.f32.gmra.mxu0 %v361
  %v412 = vpop.f32.mrf.mxu0
  %v413 = vadd.f32 0.0, %v412
  %414 = vdwg.mxu0
  %415 = vst [vmem:[%s5] sm:$0x1] %v413
  %v432 = vsel %vm106, %v329, 1.0
  %v433 = vsel %vm106, %v331, 1.0
  %v434 = vsel %vm106, %v333, 1.0
  %v435 = vsel %vm106, %v335, 1.0
  %v436 = vsel %vm106, %v337, 1.0
  %v437 = vsel %vm106, %v339, 1.0
  %v438 = vsel %vm106, %v341, 1.0
  %v439 = vsel %vm106, %v343, 1.0
  %v440 = vsel %vm106, %v345, 1.0
  %v441 = vsel %vm106, %v347, 1.0
  %v442 = vsel %vm106, %v349, 1.0
  %v443 = vsel %vm106, %v351, 1.0
  %v444 = vsel %vm106, %v353, 1.0
  %v445 = vsel %vm106, %v355, 1.0
  %v446 = vsel %vm106, %v357, 1.0
  %v447 = vsel %vm106, %v359, 1.0
  %v448 = vpack.c.bf16 %v432, %v432
  %v449 = vpack.c.bf16 %v433, %v433
  %v450 = vpack.c.bf16 %v434, %v434
  %v451 = vpack.c.bf16 %v435, %v435
  %v452 = vpack.c.bf16 %v436, %v436
  %v453 = vpack.c.bf16 %v437, %v437
  %v454 = vpack.c.bf16 %v438, %v438
  %v455 = vpack.c.bf16 %v439, %v439
  %v456 = vpack.c.bf16 %v440, %v440
  %v457 = vpack.c.bf16 %v441, %v441
  %v458 = vpack.c.bf16 %v442, %v442
  %v459 = vpack.c.bf16 %v443, %v443
  %v460 = vpack.c.bf16 %v444, %v444
  %v461 = vpack.c.bf16 %v445, %v445
  %v462 = vpack.c.bf16 %v446, %v446
  %v463 = vpack.c.bf16 %v447, %v447
  %464 = vst [vmem:[%s3] sm:$0xf] %v448
  %465 = vst [vmem:[%s3 + $0x4] sm:$0xf] %v449
  %466 = vst [vmem:[%s3 + $0x8] sm:$0xf] %v450
  %467 = vst [vmem:[%s3 + $0xc] sm:$0xf] %v451
  %468 = vst [vmem:[%s3 + $0x10] sm:$0xf] %v452
  %469 = vst [vmem:[%s3 + $0x14] sm:$0xf] %v453
  %470 = vst [vmem:[%s3 + $0x18] sm:$0xf] %v454
  %471 = vst [vmem:[%s3 + $0x1c] sm:$0xf] %v455
  %472 = vst [vmem:[%s3 + $0x20] sm:$0xf] %v456
  %473 = vst [vmem:[%s3 + $0x24] sm:$0xf] %v457
  %474 = vst [vmem:[%s3 + $0x28] sm:$0xf] %v458
  %475 = vst [vmem:[%s3 + $0x2c] sm:$0xf] %v459
  %476 = vst [vmem:[%s3 + $0x30] sm:$0xf] %v460
  %477 = vst [vmem:[%s3 + $0x34] sm:$0xf] %v461
  %478 = vst [vmem:[%s3 + $0x38] sm:$0xf] %v462
  %479 = vst [vmem:[%s3 + $0x3c] sm:$0xf] %v463
  // Predicated region
  $region14: #{gatv2_conv_multi.3} parent=0 // pred_check
    _
  $region15: #{gatv2_conv_multi.3} parent=0 // pred_check_branch
    %481 = sbr.rel (0) target = $region17
  $region16: #{gatv2_conv_multi.3} parent=0 // pred_region
    _
  $region17: #{gatv2_conv_multi.3} parent=0 // pred_fallthru
    _
  // Predicated region
  $region18: #{gatv2_conv_multi.3} parent=0 // pred_check
    _
  $region19: #{gatv2_conv_multi.3} parent=0 // pred_check_branch
    %483 = sbr.rel (0) target = $region21
  $region20: #{gatv2_conv_multi.3} parent=0 // pred_region
    _
  $region21: #{gatv2_conv_multi.3} parent=0 // pred_fallthru
    _
  // Predicated region
  $region22: #{gatv2_conv_multi.3} parent=0 // pred_check
    _
  $region23: #{gatv2_conv_multi.3} parent=0 // pred_check_branch
    %485 = sbr.rel (0) target = $region25
  $region24: #{gatv2_conv_multi.3} parent=0 // pred_region
    _
  $region25: #{gatv2_conv_multi.3} parent=0 // pred_fallthru
    _
  // Predicated region
  $region26: #{gatv2_conv_multi.3} parent=0 // pred_check
    _
  $region27: #{gatv2_conv_multi.3} parent=0 // pred_check_branch
    %487 = sbr.rel (0) target = $region29
  $region28: #{gatv2_conv_multi.3} parent=0 // pred_region
    _
  $region29: #{gatv2_conv_multi.3} parent=0 // pred_fallthru
    _
  // Predicated region
  $region30: #{gatv2_conv_multi.3} parent=0 // pred_check
    _
  $region31: #{gatv2_conv_multi.3} parent=0 // pred_check_branch
    %489 = sbr.rel (0) target = $region33
  $region32: #{gatv2_conv_multi.3} parent=0 // pred_region
    _
  $region33: #{gatv2_conv_multi.3} parent=0 // pred_fallthru
    _
  // Predicated region
  $region34: #{gatv2_conv_multi.3} parent=0 // pred_check
    _
  $region35: #{gatv2_conv_multi.3} parent=0 // pred_check_branch
    %491 = sbr.rel (0) target = $region37
  $region36: #{gatv2_conv_multi.3} parent=0 // pred_region
    _
  $region37: #{gatv2_conv_multi.3} parent=0 // pred_fallthru
    _

// kernel: gatv2_conv_multi.5
$region0: #{gatv2_conv_multi.5}
  #allocation0 [shape = 'u32[]', space=smem, size = 0x4, offset = 0x4, fixed_abs, tag = 'smem constant byte address 0x4 - core index']
  #allocation1 [shape = 'u32[72,128]{1,0:T(1,128)}', space=vmem, size = 0x9000, scoped, tag = 'internal scratch']
  %s0 = inlined_call_operand.vmem [shape: f32[2], index: 0, kind: input, shape index: {}]
  %s1 = inlined_call_operand.vmem [shape: f32[128,1], index: 1, kind: input, shape index: {}]
  %s2 = inlined_call_operand.vmem [shape: f32[1,128], index: 2, kind: input, shape index: {}]
  %s3 = inlined_call_operand.vmem [shape: s8[128,128], index: 3, kind: input, shape index: {}]
  %s4 = inlined_call_operand.vmem [shape: bf16[128,128], index: 4, kind: input, shape index: {}]
  %s5 = inlined_call_operand.vmem [shape: bf16[128,128], index: 5, kind: output, shape index: {}]
  %s6 = sld [smem:[#allocation0]]
  $region57: #{gatv2_conv_multi.5} parent=0
    _
  %s8 = ssub.s32 1, %s6
  %s9 = scalar_select 0, %s8, %s6
  $region1: #{gatv2_conv_multi.5} parent=0
    #allocation2 [shape = 'u8[512]{0}', space=smem, size = 0x200, scoped, tag = 'input window, operand 0, single buffered']
    #allocation3 [shape = 's32[2]{0}', space=sflag, size = 0x8, scoped, tag = 'scoped memory for gatv2_conv_multi.5']
    %10 = vsyncpa [#allocation3], 0
    loop: start=0, step=1, limit=4
    $region2: #{gatv2_conv_multi.5} parent=1 // loop_pre_header
      _
    $region3: #{gatv2_conv_multi.5} parent=1 // loop_header
      %s12 = sphi 0, %s16
      %p13 = scmp.ge.s32.totalorder %s12, 4
      %s20 = sphi 0, %s20
      %s22 = sphi 0, %s20
      %s23 = sphi 0, %s22
      %s37 = sphi 0, %s23
      %s43 = sphi 0, %s45
      %s46 = sphi 0, %s43
      %s47 = sphi 0, %s46
      %s63 = sphi 0, %s47
      %s67 = sphi 0, %s67
      %s69 = sphi 0, %s67
      %s70 = sphi 0, %s69
      %s84 = sphi 0, %s70
      %s90 = sphi 0, %s92
      %s93 = sphi 0, %s90
      %s94 = sphi 0, %s93
      %s110 = sphi 0, %s94
      %s114 = sphi 0, %s114
      %s116 = sphi 0, %s114
      %s117 = sphi 0, %s116
      %s131 = sphi 0, %s117
      %s137 = sphi 0, %s139
      %s140 = sphi 0, %s137
      %s141 = sphi 0, %s140
      %s157 = sphi 0, %s141
    $region4: #{gatv2_conv_multi.5} parent=1 // loop_header_branch
      %15 = sbr.rel (%p13) target = $region8
    $region5: #{gatv2_conv_multi.5} parent=1 // loop_body
      %s17 = ssub.s32 %s12, 1
      %s18 = ssub.s32 %s12, 2
      %s19 = sadd.s32 %s12, 1
      %s21 = sadd.s32 %s20, 1
      %p24 = scmp.eq.s32.totalorder %s12, 1
      %p25 = scmp.ne.s32.totalorder %s20, %s22
      %p26 = scmp.eq.s32.totalorder %s12, 0
      %p27 = por %p25, %p26
      %p28 = scmp.ne.s32.totalorder %s20, %s22
      %p29 = scmp.eq.s32.totalorder %s17, 1
      %p30 = por %p28, %p29
      %p31 = scmp.ne.s32.totalorder %s22, %s23
      %p32 = scmp.eq.s32.totalorder %s17, 0
      %p33 = por %p31, %p32
      %p34 = scmp.ne.s32.totalorder %s22, %s23
      %p35 = scmp.eq.s32.totalorder %s18, 1
      %p36 = por %p34, %p35
      %p38 = scmp.ne.s32.totalorder %s23, %s37
      %p39 = scmp.eq.s32.totalorder %s18, 0
      %p40 = por %p38, %p39
      %s41 = ssub.s32 %s12, %s19
      %p42 = scmp.eq.s32.totalorder %s41, 0
      %s44 = sadd.s32 %s43, 1
      %s45 = scalar_select %p42, %s43, %s44
      %p48 = pneg %p42
      %p49 = scmp.eq.s32.totalorder %s12, 1
      %p50 = por %p48, %p49
      %p51 = scmp.ne.s32.totalorder %s43, %s46
      %p52 = scmp.eq.s32.totalorder %s12, 0
      %p53 = por %p51, %p52
      %p54 = scmp.ne.s32.totalorder %s43, %s46
      %p55 = scmp.eq.s32.totalorder %s17, 1
      %p56 = por %p54, %p55
      %p57 = scmp.ne.s32.totalorder %s46, %s47
      %p58 = scmp.eq.s32.totalorder %s17, 0
      %p59 = por %p57, %p58
      %p60 = scmp.ne.s32.totalorder %s46, %s47
      %p61 = scmp.eq.s32.totalorder %s18, 1
      %p62 = por %p60, %p61
      %p64 = scmp.ne.s32.totalorder %s47, %s63
      %p65 = scmp.eq.s32.totalorder %s18, 0
      %p66 = por %p64, %p65
      %s68 = sadd.s32 %s67, 1
      %p71 = scmp.eq.s32.totalorder %s12, 1
      %p72 = scmp.ne.s32.totalorder %s67, %s69
      %p73 = scmp.eq.s32.totalorder %s12, 0
      %p74 = por %p72, %p73
      %p75 = scmp.ne.s32.totalorder %s67, %s69
      %p76 = scmp.eq.s32.totalorder %s17, 1
      %p77 = por %p75, %p76
      %p78 = scmp.ne.s32.totalorder %s69, %s70
      %p79 = scmp.eq.s32.totalorder %s17, 0
      %p80 = por %p78, %p79
      %p81 = scmp.ne.s32.totalorder %s69, %s70
      %p82 = scmp.eq.s32.totalorder %s18, 1
      %p83 = por %p81, %p82
      %p85 = scmp.ne.s32.totalorder %s70, %s84
      %p86 = scmp.eq.s32.totalorder %s18, 0
      %p87 = por %p85, %p86
      %s88 = ssub.s32 %s12, %s19
      %p89 = scmp.eq.s32.totalorder %s88, 0
      %s91 = sadd.s32 %s90, 1
      %s92 = scalar_select %p89, %s90, %s91
      %p95 = pneg %p89
      %p96 = scmp.eq.s32.totalorder %s12, 1
      %p97 = por %p95, %p96
      %p98 = scmp.ne.s32.totalorder %s90, %s93
      %p99 = scmp.eq.s32.totalorder %s12, 0
      %p100 = por %p98, %p99
      %p101 = scmp.ne.s32.totalorder %s90, %s93
      %p102 = scmp.eq.s32.totalorder %s17, 1
      %p103 = por %p101, %p102
      %p104 = scmp.ne.s32.totalorder %s93, %s94
      %p105 = scmp.eq.s32.totalorder %s17, 0
      %p106 = por %p104, %p105
      %p107 = scmp.ne.s32.totalorder %s93, %s94
      %p108 = scmp.eq.s32.totalorder %s18, 1
      %p109 = por %p107, %p108
      %p111 = scmp.ne.s32.totalorder %s94, %s110
      %p112 = scmp.eq.s32.totalorder %s18, 0
      %p113 = por %p111, %p112
      %s115 = sadd.s32 %s114, 1
      %p118 = scmp.eq.s32.totalorder %s12, 1
      %p119 = scmp.ne.s32.totalorder %s114, %s116
      %p120 = scmp.eq.s32.totalorder %s12, 0
      %p121 = por %p119, %p120
      %p122 = scmp.ne.s32.totalorder %s114, %s116
      %p123 = scmp.eq.s32.totalorder %s17, 1
      %p124 = por %p122, %p123
      %p125 = scmp.ne.s32.totalorder %s116, %s117
      %p126 = scmp.eq.s32.totalorder %s17, 0
      %p127 = por %p125, %p126
      %p128 = scmp.ne.s32.totalorder %s116, %s117
      %p129 = scmp.eq.s32.totalorder %s18, 1
      %p130 = por %p128, %p129
      %p132 = scmp.ne.s32.totalorder %s117, %s131
      %p133 = scmp.eq.s32.totalorder %s18, 0
      %p134 = por %p132, %p133
      %s135 = ssub.s32 %s12, %s19
      %p136 = scmp.eq.s32.totalorder %s135, 0
      %s138 = sadd.s32 %s137, 1
      %s139 = scalar_select %p136, %s137, %s138
      %p142 = pneg %p136
      %p143 = scmp.eq.s32.totalorder %s12, 1
      %p144 = por %p142, %p143
      %p145 = scmp.ne.s32.totalorder %s137, %s140
      %p146 = scmp.eq.s32.totalorder %s12, 0
      %p147 = por %p145, %p146
      %p148 = scmp.ne.s32.totalorder %s137, %s140
      %p149 = scmp.eq.s32.totalorder %s17, 1
      %p150 = por %p148, %p149
      %p151 = scmp.ne.s32.totalorder %s140, %s141
      %p152 = scmp.eq.s32.totalorder %s17, 0
      %p153 = por %p151, %p152
      %p154 = scmp.ne.s32.totalorder %s140, %s141
      %p155 = scmp.eq.s32.totalorder %s18, 1
      %p156 = por %p154, %p155
      %p158 = scmp.ne.s32.totalorder %s141, %s157
      %p159 = scmp.eq.s32.totalorder %s18, 0
      %p160 = por %p158, %p159
      %p161 = scmp.le.s32.totalorder 1, %s12
      %p162 = scmp.lt.s32.totalorder %s12, 3
      %p163 = pnand %p161, %p162
      %p164 = pneg %p163
      // Predicated region
      $region9: #{gatv2_conv_multi.5} parent=5 // pred_check
        _
      $region10: #{gatv2_conv_multi.5} parent=5 // pred_check_branch
        %166 = sbr.rel (%p163) target = $region12
      $region11: #{gatv2_conv_multi.5} parent=5 // pred_region
        %s167 = ssub.s32 %s12, 1
        // Predicated region
        $region13: #{gatv2_conv_multi.5} parent=11 // pred_check
          %p168 = pneg %p33
        $region14: #{gatv2_conv_multi.5} parent=11 // pred_check_branch
          %170 = sbr.rel (%p168) target = $region16
        $region15: #{gatv2_conv_multi.5} parent=11 // pred_region
          %172 = vsyncadd [#allocation3], 0
          %s174 = sshll.u32 %s0, 4
          %s175 = int_to_ptr.vmem [resolvable:$true] %s174
          %177 = dma.vmem_to_smem %s175, 16, [#allocation2], [#allocation3]
        $region16: #{gatv2_conv_multi.5} parent=11 // pred_fallthru
          _
        // Predicated region
        $region17: #{gatv2_conv_multi.5} parent=11 // pred_check
          %p178 = pneg %p80
        $region18: #{gatv2_conv_multi.5} parent=11 // pred_check_branch
          %180 = sbr.rel (%p178) target = $region20
        $region19: #{gatv2_conv_multi.5} parent=11 // pred_region
          _
        $region20: #{gatv2_conv_multi.5} parent=11 // pred_fallthru
          _
        // Predicated region
        $region21: #{gatv2_conv_multi.5} parent=11 // pred_check
          %p181 = pneg %p127
        $region22: #{gatv2_conv_multi.5} parent=11 // pred_check_branch
          %183 = sbr.rel (%p181) target = $region24
        $region23: #{gatv2_conv_multi.5} parent=11 // pred_region
          _
        $region24: #{gatv2_conv_multi.5} parent=11 // pred_fallthru
          _
      $region12: #{gatv2_conv_multi.5} parent=5 // pred_fallthru
        _
      %p184 = scmp.lt.s32.totalorder %s12, 2
      // Predicated region
      $region25: #{gatv2_conv_multi.5} parent=5 // pred_check
        %p185 = pneg %p184
      $region26: #{gatv2_conv_multi.5} parent=5 // pred_check_branch
        %187 = sbr.rel (%p185) target = $region28
      $region27: #{gatv2_conv_multi.5} parent=5 // pred_region
        // Predicated region
        $region29: #{gatv2_conv_multi.5} parent=27 // pred_check
          %p188 = pneg %p53
        $region30: #{gatv2_conv_multi.5} parent=27 // pred_check_branch
          %190 = sbr.rel (%p188) target = $region32
        $region31: #{gatv2_conv_multi.5} parent=27 // pred_region
          %s191 = smul.u32 8, %s12
          %p192 = scmp.lt.s32.totalorder %s191, 15
          %s193 = scalar_select %p192, %s191, 15
          %s194 = smul.addr %s193, 8
          %s195 = scalar_lea.vmem %s1, %s194
          %s196 = smul.u32 8, %s12
        $region32: #{gatv2_conv_multi.5} parent=27 // pred_fallthru
          _
        // Predicated region
        $region33: #{gatv2_conv_multi.5} parent=27 // pred_check
          %p197 = pneg %p100
        $region34: #{gatv2_conv_multi.5} parent=27 // pred_check_branch
          %199 = sbr.rel (%p197) target = $region36
        $region35: #{gatv2_conv_multi.5} parent=27 // pred_region
          %s200 = smul.u32 2, %s12
          %p201 = scmp.lt.s32.totalorder %s200, 3
          %s202 = scalar_select %p201, %s200, 3
          %s203 = smul.addr %s202, 8
          %s204 = scalar_lea.vmem %s3, %s203
          %s205 = smul.u32 2, %s12
        $region36: #{gatv2_conv_multi.5} parent=27 // pred_fallthru
          _
      $region28: #{gatv2_conv_multi.5} parent=5 // pred_fallthru
        _
      %p206 = scmp.le.s32.totalorder 1, %s12
      %p207 = scmp.lt.s32.totalorder %s12, 3
      %p208 = pnand %p206, %p207
      %p209 = pneg %p208
      // Predicated region
      $region37: #{gatv2_conv_multi.5} parent=5 // pred_check
        _
      $region38: #{gatv2_conv_multi.5} parent=5 // pred_check_branch
        %211 = sbr.rel (%p208) target = $region40
      $region39: #{gatv2_conv_multi.5} parent=5 // pred_region
        %s212 = ssub.s32 %s12, 1
        // Predicated region
        $region41: #{gatv2_conv_multi.5} parent=39 // pred_check
          %p213 = pneg %p33
        $region42: #{gatv2_conv_multi.5} parent=39 // pred_check_branch
          %215 = sbr.rel (%p213) target = $region44
        $region43: #{gatv2_conv_multi.5} parent=39 // pred_region
          %217 = dma.done [#allocation3], 16
        $region44: #{gatv2_conv_multi.5} parent=39 // pred_fallthru
          _
        %218 = sfence
        %p219 = pneg %p33
        %p220 = pneg %p30
        %s221 = smul.u32 8, %s17
        %p222 = scmp.lt.s32.totalorder %s221, 15
        %s223 = scalar_select %p222, %s221, 15
        %s224 = smul.addr %s223, 8
        %s225 = scalar_lea.vmem %s1, %s224
        %p226 = pneg %p59
        %p227 = pneg %p56
        %p228 = pneg %p80
        %p229 = pneg %p77
        %s230 = smul.u32 2, %s17
        %p231 = scmp.lt.s32.totalorder %s230, 3
        %s232 = scalar_select %p231, %s230, 3
        %s233 = smul.addr %s232, 8
        %s234 = scalar_lea.vmem %s3, %s233
        %p235 = pneg %p106
        %p236 = pneg %p103
        %p237 = pneg %p127
        %p238 = pneg %p124
        %p239 = pneg %p153
        %p240 = pneg %p150
        %s241 = smul.u32 8, %s17
        %p242 = scmp.lt.s32.totalorder %s241, 15
        %s243 = scalar_select %p242, %s241, 15
        %s244 = smul.addr %s243, 4
        %s245 = scalar_lea.vmem %s5, %s244
        %s246 = smul.u32 8, %s17
        %p247 = scmp.lt.s32.totalorder %s246, 15
        %s248 = scalar_select %p247, %s246, 15
        %s249 = smul.addr %s248, 8
        %s250 = scalar_lea.vmem %s1, %s249
        %s251 = smul.u32 8, %s17
        %s252 = smul.u32 2, %s17
        %p253 = scmp.lt.s32.totalorder %s252, 3
        %s254 = scalar_select %p253, %s252, 3
        %s255 = smul.addr %s254, 8
        %s256 = scalar_lea.vmem %s3, %s255
        %s257 = smul.u32 2, %s17
        %s258 = smul.u32 8, %s17
        %p259 = scmp.lt.s32.totalorder %s258, 15
        %s260 = scalar_select %p259, %s258, 15
        %s261 = smul.addr %s260, 4
        %s262 = scalar_lea.vmem %s5, %s261
        %s263 = smul.u32 8, %s17
        %s266 = sld [smem:[#allocation2]]
        %s267 = sld [smem:[#allocation2 + $0x1]]
        %v268 = vld [vmem:[%s250] sm:$0xff]
        %v269 = vld [vmem:[%s250 + $0x8] sm:$0xff]
        %v270 = vld [vmem:[%s250 + $0x10] sm:$0xff]
        %v271 = vld [vmem:[%s250 + $0x18] sm:$0xff]
        %v272 = vld [vmem:[%s250 + $0x20] sm:$0xff]
        %v273 = vld [vmem:[%s250 + $0x28] sm:$0xff]
        %v274 = vld [vmem:[%s250 + $0x30] sm:$0xff]
        %v275 = vld [vmem:[%s250 + $0x38] sm:$0xff]
        %v276 = vld [vmem:[%s2] sm:$0x1]
        %278 = vset.pattern.permute.xlu0 0
        %279 = vperm.xlu0 %278, %v268
        %v280 = vpop.permute.xlu0 %279
        %283 = vset.pattern.permute.xlu0 0
        %284 = vperm.xlu0 %283, %v269
        %v285 = vpop.permute.xlu0 %284
        %288 = vset.pattern.permute.xlu0 0
        %289 = vperm.xlu0 %288, %v270
        %v290 = vpop.permute.xlu0 %289
        %293 = vset.pattern.permute.xlu0 0
        %294 = vperm.xlu0 %293, %v271
        %v295 = vpop.permute.xlu0 %294
        %298 = vset.pattern.permute.xlu0 0
        %299 = vperm.xlu0 %298, %v272
        %v300 = vpop.permute.xlu0 %299
        %303 = vset.pattern.permute.xlu0 0
        %304 = vperm.xlu0 %303, %v273
        %v305 = vpop.permute.xlu0 %304
        %308 = vset.pattern.permute.xlu0 0
        %309 = vperm.xlu0 %308, %v274
        %v310 = vpop.permute.xlu0 %309
        %313 = vset.pattern.permute.xlu0 0
        %314 = vperm.xlu0 %313, %v275
        %v315 = vpop.permute.xlu0 %314
        %v318 = vperm.slane %v276, 0
        %v320 = vadd.f32 %v280, %v318
        %v321 = vadd.f32 %v285, %v318
        %v322 = vadd.f32 %v290, %v318
        %v323 = vadd.f32 %v295, %v318
        %v324 = vadd.f32 %v300, %v318
        %v325 = vadd.f32 %v305, %v318
        %v326 = vadd.f32 %v310, %v318
        %v327 = vadd.f32 %v315, %v318
        %v328 = vld [vmem:[%s256] sm:$0xff]
        %v329 = vld [vmem:[%s256 + $0x8] sm:$0xff]
        %vm330 = vnez %v328
        %vm331 = vnez %v329
        %v332 = vstv %s266
        %v333 = vsub.f32 %v320, %v332
        %v334 = vsub.f32 %v321, %v332
        %v335 = vsub.f32 %v322, %v332
        %v336 = vsub.f32 %v323, %v332
        %v337 = vsub.f32 %v324, %v332
        %v338 = vsub.f32 %v325, %v332
        %v339 = vsub.f32 %v326, %v332
        %v340 = vsub.f32 %v327, %v332
        %v341 = vstv %s267
        %v342 = vmul.f32 %v333, %v341
        %v343 = vmul.f32 %v334, %v341
        %v344 = vmul.f32 %v335, %v341
        %v345 = vmul.f32 %v336, %v341
        %v346 = vmul.f32 %v337, %v341
        %v347 = vmul.f32 %v338, %v341
        %v348 = vmul.f32 %v339, %v341
        %v349 = vmul.f32 %v340, %v341
        %v350 = vmul.f32 %v342, 1.442695
        %v351 = vpow.pop %v350
        %v352 = vmul.f32 %v343, 1.442695
        %v353 = vpow.pop %v352
        %v354 = vmul.f32 %v344, 1.442695
        %v355 = vpow.pop %v354
        %v356 = vmul.f32 %v345, 1.442695
        %v357 = vpow.pop %v356
        %v358 = vmul.f32 %v346, 1.442695
        %v359 = vpow.pop %v358
        %v360 = vmul.f32 %v347, 1.442695
        %v361 = vpow.pop %v360
        %v362 = vmul.f32 %v348, 1.442695
        %v363 = vpow.pop %v362
        %v364 = vmul.f32 %v349, 1.442695
        %v365 = vpow.pop %v364
        %v366 = vsel %vm330, 16843009, 0
        %v367 = vsel %vm331, 16843009, 0
        %v368 = vunpack.c.0.s8 %v366
        %v369 = vunpack.c.1.s8 %v366
        %v370 = vunpack.c.2.s8 %v366
        %v371 = vunpack.c.3.s8 %v366
        %v372 = vunpack.c.0.s8 %v367
        %v373 = vunpack.c.1.s8 %v367
        %v374 = vunpack.c.2.s8 %v367
        %v375 = vunpack.c.3.s8 %v367
        %v376 = vpack.c.b16 %v368, %v368
        %v377 = vpack.c.b8 %v376, %v376
        %v378 = vpack.c.b16 %v369, %v369
        %v379 = vpack.c.b8 %v378, %v378
        %v380 = vpack.c.b16 %v370, %v370
        %v381 = vpack.c.b8 %v380, %v380
        %v382 = vpack.c.b16 %v371, %v371
        %v383 = vpack.c.b8 %v382, %v382
        %v384 = vpack.c.b16 %v372, %v372
        %v385 = vpack.c.b8 %v384, %v384
        %v386 = vpack.c.b16 %v373, %v373
        %v387 = vpack.c.b8 %v386, %v386
        %v388 = vpack.c.b16 %v374, %v374
        %v389 = vpack.c.b8 %v388, %v388
        %v390 = vpack.c.b16 %v375, %v375
        %v391 = vpack.c.b8 %v390, %v390
        %vm392 = vnez %v377
        %vm393 = vnez %v379
        %vm394 = vnez %v381
        %vm395 = vnez %v383
        %vm396 = vnez %v385
        %vm397 = vnez %v387
        %vm398 = vnez %v389
        %vm399 = vnez %v391
        %v400 = vsel %vm392, 16843009, 0
        %v401 = vsel %vm393, 16843009, 0
        %v402 = vsel %vm394, 16843009, 0
        %v403 = vsel %vm395, 16843009, 0
        %v404 = vsel %vm396, 16843009, 0
        %v405 = vsel %vm397, 16843009, 0
        %v406 = vsel %vm398, 16843009, 0
        %v407 = vsel %vm399, 16843009, 0
        %v408 = vunpack.c.0.s8 %v400
        %v409 = vunpack.c.0.s8 %v401
        %v410 = vunpack.c.0.s8 %v402
        %v411 = vunpack.c.0.s8 %v403
        %v412 = vunpack.c.0.s8 %v404
        %v413 = vunpack.c.0.s8 %v405
        %v414 = vunpack.c.0.s8 %v406
        %v415 = vunpack.c.0.s8 %v407
        %vm416 = vcmp.ne.s32.totalorder %v408, 0
        %vm417 = vcmp.ne.s32.totalorder %v409, 0
        %vm418 = vcmp.ne.s32.totalorder %v410, 0
        %vm419 = vcmp.ne.s32.totalorder %v411, 0
        %vm420 = vcmp.ne.s32.totalorder %v412, 0
        %vm421 = vcmp.ne.s32.totalorder %v413, 0
        %vm422 = vcmp.ne.s32.totalorder %v414, 0
        %vm423 = vcmp.ne.s32.totalorder %v415, 0
        %v424 = vsel %vm416, %v351, 0.0
        %v425 = vsel %vm417, %v353, 0.0
        %v426 = vsel %vm418, %v355, 0.0
        %v427 = vsel %vm419, %v357, 0.0
        %v428 = vsel %vm420, %v359, 0.0
        %v429 = vsel %vm421, %v361, 0.0
        %v430 = vsel %vm422, %v363, 0.0
        %v431 = vsel %vm423, %v365, 0.0
        %v432 = vpack.c.bf16 %v425, %v424
        %v433 = vpack.c.bf16 %v427, %v426
        %v434 = vpack.c.bf16 %v429, %v428
        %v435 = vpack.c.bf16 %v431, %v430
        %v436 = vld [vmem:[%s4] sm:$0xf]
        %v437 = vld [vmem:[%s4 + $0x4] sm:$0xf]
        %v438 = vld [vmem:[%s4 + $0x8] sm:$0xf]
        %v439 = vld [vmem:[%s4 + $0xc] sm:$0xf]
        %v440 = vld [vmem:[%s4 + $0x10] sm:$0xf]
        %v441 = vld [vmem:[%s4 + $0x14] sm:$0xf]
        %v442 = vld [vmem:[%s4 + $0x18] sm:$0xf]
        %v443 = vld [vmem:[%s4 + $0x1c] sm:$0xf]
        %v444 = vld [vmem:[%s4 + $0x20] sm:$0xf]
        %v445 = vld [vmem:[%s4 + $0x24] sm:$0xf]
        %v446 = vld [vmem:[%s4 + $0x28] sm:$0xf]
        %v447 = vld [vmem:[%s4 + $0x2c] sm:$0xf]
        %v448 = vld [vmem:[%s4 + $0x30] sm:$0xf]
        %v449 = vld [vmem:[%s4 + $0x34] sm:$0xf]
        %v450 = vld [vmem:[%s4 + $0x38] sm:$0xf]
        %v451 = vld [vmem:[%s4 + $0x3c] sm:$0xf]
        %v468 = vunpack.c.l.b16 %v436
        %v469 = vunpack.c.l.b16 %v437
        %v470 = vunpack.c.l.b16 %v438
        %v471 = vunpack.c.l.b16 %v439
        %v472 = vunpack.c.l.b16 %v440
        %v473 = vunpack.c.l.b16 %v441
        %v474 = vunpack.c.l.b16 %v442
        %v475 = vunpack.c.l.b16 %v443
        %v476 = vunpack.c.l.b16 %v444
        %v477 = vunpack.c.l.b16 %v445
        %v478 = vunpack.c.l.b16 %v446
        %v479 = vunpack.c.l.b16 %v447
        %v480 = vunpack.c.l.b16 %v448
        %v481 = vunpack.c.l.b16 %v449
        %v482 = vunpack.c.l.b16 %v450
        %v483 = vunpack.c.l.b16 %v451
        %v484 = vpack.c.b16 %v469, %v468
        %v485 = vpack.c.b16 %v471, %v470
        %v486 = vpack.c.b16 %v473, %v472
        %v487 = vpack.c.b16 %v475, %v474
        %v488 = vpack.c.b16 %v477, %v476
        %v489 = vpack.c.b16 %v479, %v478
        %v490 = vpack.c.b16 %v481, %v480
        %v491 = vpack.c.b16 %v483, %v482
        %500 = vmatpush.bf16.msra.mxu0 %v491
        %501 = vmatpush.bf16.msra.mxu0 %v490
        %502 = vmatpush.bf16.msra.mxu0 %v489
        %503 = vmatpush.bf16.msra.mxu0 %v488
        %504 = vmatpush.bf16.msra.mxu0 %v487
        %505 = vmatpush.bf16.msra.mxu0 %v486
        %506 = vmatpush.bf16.msra.mxu0 %v485
        %507 = vmatpush.bf16.msra.mxu0 %v484
        %508 = vmatmul.bf16.gmra.mxu0 %v432
        %v509 = vpop.f32.mrf.mxu0
        %v510 = vadd.f32 0.0, %v509
        %v511 = vpop.f32.mrf.mxu0
        %v512 = vadd.f32 0.0, %v511
        %513 = vmatmul.bf16.gmra.mxu0 %v433
        %v514 = vpop.f32.mrf.mxu0
        %v515 = vadd.f32 0.0, %v514
        %v516 = vpop.f32.mrf.mxu0
        %v517 = vadd.f32 0.0, %v516
        %518 = vmatmul.bf16.gmra.mxu0 %v434
        %v519 = vpop.f32.mrf.mxu0
        %v520 = vadd.f32 0.0, %v519
        %v521 = vpop.f32.mrf.mxu0
        %v522 = vadd.f32 0.0, %v521
        %523 = vmatmul.bf16.gmra.mxu0 %v435
        %v524 = vpop.f32.mrf.mxu0
        %v525 = vadd.f32 0.0, %v524
        %v526 = vpop.f32.mrf.mxu0
        %v527 = vadd.f32 0.0, %v526
        %528 = vdwg.mxu0
        %v529 = vmax.f32 %v510, 1e-20
        %v530 = vmax.f32 %v512, 1e-20
        %v531 = vmax.f32 %v515, 1e-20
        %v532 = vmax.f32 %v517, 1e-20
        %v533 = vmax.f32 %v520, 1e-20
        %v534 = vmax.f32 %v522, 1e-20
        %v535 = vmax.f32 %v525, 1e-20
        %v536 = vmax.f32 %v527, 1e-20
        %v537 = vrcp.pop %v529
        %v538 = vrcp.pop %v530
        %v539 = vrcp.pop %v531
        %v540 = vrcp.pop %v532
        %v541 = vrcp.pop %v533
        %v542 = vrcp.pop %v534
        %v543 = vrcp.pop %v535
        %v544 = vrcp.pop %v536
        %546 = vset.pattern.permute.xlu0 64
        %547 = vperm.xlu0 %546, %v537
        %v548 = vpop.permute.xlu0 %547
        %551 = vset.pattern.permute.xlu0 64
        %552 = vperm.xlu0 %551, %v538
        %v553 = vpop.permute.xlu0 %552
        %556 = vset.pattern.permute.xlu0 64
        %557 = vperm.xlu0 %556, %v539
        %v558 = vpop.permute.xlu0 %557
        %561 = vset.pattern.permute.xlu0 64
        %562 = vperm.xlu0 %561, %v540
        %v563 = vpop.permute.xlu0 %562
        %566 = vset.pattern.permute.xlu0 64
        %567 = vperm.xlu0 %566, %v541
        %v568 = vpop.permute.xlu0 %567
        %571 = vset.pattern.permute.xlu0 64
        %572 = vperm.xlu0 %571, %v542
        %v573 = vpop.permute.xlu0 %572
        %576 = vset.pattern.permute.xlu0 64
        %577 = vperm.xlu0 %576, %v543
        %v578 = vpop.permute.xlu0 %577
        %581 = vset.pattern.permute.xlu0 64
        %582 = vperm.xlu0 %581, %v544
        %v583 = vpop.permute.xlu0 %582
        %v585 = vmul.f32 %v510, %v548
        %v586 = vmul.f32 %v512, %v553
        %v587 = vmul.f32 %v515, %v558
        %v588 = vmul.f32 %v517, %v563
        %v589 = vmul.f32 %v520, %v568
        %v590 = vmul.f32 %v522, %v573
        %v591 = vmul.f32 %v525, %v578
        %v592 = vmul.f32 %v527, %v583
        %v593 = vpack.c.bf16 %v585, %v585
        %v594 = vpack.c.bf16 %v586, %v586
        %v595 = vpack.c.bf16 %v587, %v587
        %v596 = vpack.c.bf16 %v588, %v588
        %v597 = vpack.c.bf16 %v589, %v589
        %v598 = vpack.c.bf16 %v590, %v590
        %v599 = vpack.c.bf16 %v591, %v591
        %v600 = vpack.c.bf16 %v592, %v592
        %601 = vst [vmem:[%s262] sm:$0xf] %v593
        %602 = vst [vmem:[%s262 + $0x4] sm:$0xf] %v594
        %603 = vst [vmem:[%s262 + $0x8] sm:$0xf] %v595
        %604 = vst [vmem:[%s262 + $0xc] sm:$0xf] %v596
        %605 = vst [vmem:[%s262 + $0x10] sm:$0xf] %v597
        %606 = vst [vmem:[%s262 + $0x14] sm:$0xf] %v598
        %607 = vst [vmem:[%s262 + $0x18] sm:$0xf] %v599
        %608 = vst [vmem:[%s262 + $0x1c] sm:$0xf] %v600
        %s609 = smul.u32 8, %s17
        %p610 = scmp.lt.s32.totalorder %s609, 15
        %s611 = scalar_select %p610, %s609, 15
        %s612 = smul.addr %s611, 4
        %s613 = scalar_lea.vmem %s5, %s612
        // Predicated region
        $region45: #{gatv2_conv_multi.5} parent=39 // pred_check
          %p614 = pneg %p150
        $region46: #{gatv2_conv_multi.5} parent=39 // pred_check_branch
          %616 = sbr.rel (%p614) target = $region48
        $region47: #{gatv2_conv_multi.5} parent=39 // pred_region
          %s617 = smul.u32 8, %s17
        $region48: #{gatv2_conv_multi.5} parent=39 // pred_fallthru
          _
      $region40: #{gatv2_conv_multi.5} parent=5 // pred_fallthru
        _
      %p618 = scmp.le.s32.totalorder 2, %s12
      // Predicated region
      $region49: #{gatv2_conv_multi.5} parent=5 // pred_check
        %p619 = pneg %p618
      $region50: #{gatv2_conv_multi.5} parent=5 // pred_check_branch
        %621 = sbr.rel (%p619) target = $region52
      $region51: #{gatv2_conv_multi.5} parent=5 // pred_region
        %s622 = ssub.s32 %s12, 2
        // Predicated region
        $region53: #{gatv2_conv_multi.5} parent=51 // pred_check
          %p623 = pneg %p156
        $region54: #{gatv2_conv_multi.5} parent=51 // pred_check_branch
          %625 = sbr.rel (%p623) target = $region56
        $region55: #{gatv2_conv_multi.5} parent=51 // pred_region
          %s626 = smul.u32 8, %s18
          %p627 = scmp.lt.s32.totalorder %s626, 15
          %s628 = scalar_select %p627, %s626, 15
          %s629 = smul.addr %s628, 4
          %s630 = scalar_lea.vmem %s5, %s629
        $region56: #{gatv2_conv_multi.5} parent=51 // pred_fallthru
          _
      $region52: #{gatv2_conv_multi.5} parent=5 // pred_fallthru
        _
    $region6: #{gatv2_conv_multi.5} parent=1 // loop_footer
      %s16 = sadd.s32 1, %s12
    $region7: #{gatv2_conv_multi.5} parent=1 // loop_footer_branch
      %11 = sbr.rel target = $region3
    $region8: #{gatv2_conv_multi.5} parent=1 // loop_exit
      _
    %631 = vsyncpa [#allocation3], 1
    %s632 = scalar_lea.sflag [#allocation3], 1
    %633 = vsyncpa %s632, 1

</llo_original>
